<compile_context>
chip_gen: v6e
topology: v6e:2x2x1
jax: 0.10.0
libtpu: 0.0.40
codegen_flags: <defaults>
</compile_context>

<pallas_src>
import functools
import math

import numpy as np
import jax
import jax.numpy as jnp
from jax.experimental import pallas as pl
from jax.experimental.pallas import tpu as pltpu


# ----------------------------------------------------------------------------
# Kernel: one batch tile (Bt elements) per grid step.
# ----------------------------------------------------------------------------
def mha_map_kernel(xq_ref, xk_ref, xv_ref, qpos_ref, kpos_ref, bias_ref,
                   wq_ref, bq_ref, wk_ref, bk_ref, wv_ref, bv_ref,
                   w_ref, raw_ref, res_ref, *, num_heads, matmul_dtype):
    bt, nq, hnk = w_ref.shape                 # (Bt, Nq, H*Nk_pad)
    nk = hnk // num_heads
    dh = wq_ref.shape[1]
    hd = dh // num_heads
    f32 = jnp.float32

    # ---- positional adds in f32 (input dtype), one cast to the MXU operand dtype ----
    xq = (xq_ref[...] + qpos_ref[...]).astype(matmul_dtype)   # (Bt*Nq, Dq)
    xk = (xk_ref[...] + kpos_ref[...]).astype(matmul_dtype)   # (Bt*Nk, Dq)
    xv = xv_ref[...].astype(matmul_dtype)                     # (Bt*Nk, Dq)

    # ---- projections: Bt*N rows flattened into the MXU M dimension, f32 accumulate ----
    # normalize_fact is already folded into wq/bq by the wrapper; weight refs are
    # already in matmul_dtype; biases are added in f32, then one cast per tensor.
    q = (jnp.dot(xq, wq_ref[...], preferred_element_type=f32) + bq_ref[...]).astype(matmul_dtype)
    k = (jnp.dot(xk, wk_ref[...], preferred_element_type=f32) + bk_ref[...]).astype(matmul_dtype)
    v = (jnp.dot(xv, wv_ref[...], preferred_element_type=f32) + bv_ref[...]).astype(matmul_dtype)

    # additive key bias (-inf at masked / padded keys), broadcast ONCE (hoisted out of loop)
    bias_b = jnp.broadcast_to(bias_ref[...], (bt, nq, nk)).astype(f32)

    # static head loop; each head's results go straight into lane slices of the outputs
    for h in range(num_heads):
        lo = h * hd
        qh = q[:, lo:lo + hd].reshape(bt, nq, hd)
        kh = k[:, lo:lo + hd].reshape(bt, nk, hd)
        vh = v[:, lo:lo + hd].reshape(bt, nk, hd)

        s = jnp.einsum('bqc,bkc->bqk', qh, kh,
                       preferred_element_type=f32) + bias_b                  # (Bt, Nq, Nk)
        raw_ref[:, :, h * nk:(h + 1) * nk] = s.astype(raw_ref.dtype)

        m = jnp.max(s, axis=-1, keepdims=True)
        e = jnp.exp(s - m)                    # masked / padded keys -> exp(-inf) = 0
        # NOTE: a fully-masked key row yields NaN here, exactly like torch.softmax(-inf row).
        p = e / jnp.sum(e, axis=-1, keepdims=True)
        w_ref[:, :, h * nk:(h + 1) * nk] = p.astype(w_ref.dtype)

        res_ref[:, :, lo:lo + hd] = jnp.einsum(
            'bqk,bkc->bqc', p.astype(matmul_dtype), vh,
            preferred_element_type=f32).astype(res_ref.dtype)


# ----------------------------------------------------------------------------
# Generation-aware VMEM budget + batch-tile selection.
# ----------------------------------------------------------------------------
def _tpu_vmem_bytes():
    try:
        return int(pltpu.get_tpu_info().vmem_capacity_bytes)
    except Exception:
        return 64 << 20   # conservative fallback (v7x per-TC VMEM)


def _pick_batch_tile(B, Nq, Nk, Dq, Dh, H, vmem_budget_bytes, min_steps=4):
    def bytes_per_step(bt):
        row_in = bt * (2 * Nq + 3 * Nk) * Dq            # xq,pq + xk,pk,xv row tiles
        proj = bt * (Nq + 2 * Nk) * Dh                  # q/k/v projections live
        head = 4 * bt * Nq * Nk + bt * Nq * Dh          # bias bcast + score/exp/prob slabs
        outs = bt * Nq * (2 * H * Nk + Dh)
        wts = 3 * Dq * Dh + 3 * Dh + bt * Nk
        return 4 * (2 * (row_in + outs + wts) + proj + head)   # ~f32, double-buffered IO

    need = min(min_steps, B)     # keep >=2-4 grid steps so the pipeline can overlap
    cands = [bt for bt in range(1, B + 1)
             if B % bt == 0 and (B // bt) >= need
             and bytes_per_step(bt) <= vmem_budget_bytes]
    if not cands:
        return 1
    even = [bt for bt in cands if (B // bt) % 2 == 0]   # even step count -> both v7x TCs busy
    return max(even) if even else max(cands)


# ----------------------------------------------------------------------------
# Wrapper: host-side layout plumbing + pallas_call.
# ----------------------------------------------------------------------------
def mh_attention_map(q, k, v, params, num_heads,
                     q_embed=None, kv_embed=None, mask=None,
                     bt=None, matmul_dtype=jnp.bfloat16):
    f32 = jnp.float32
    B, Nq, Dq = q.shape
    _, Nk, _ = k.shape
    Dh = params["wq"].shape[1]
    assert Dh % num_heads == 0
    hd = Dh // num_heads
    normalize_fact = float(Dh / num_heads) ** (-0.5)

    # with_pos (w_pos=True); None -> zeros (identity)
    q_embed = jnp.zeros_like(q) if q_embed is None else q_embed.reshape(q.shape)
    kv_embed = jnp.zeros_like(k) if kv_embed is None else kv_embed.reshape(k.shape)

    # Pad Nk so the weights/raw output last dim (H*Nk_pad) is a multiple of 128
    # (lane-dense stores). Pad keys get a -inf bias -> zero softmax weight, and are
    # sliced off below. Skip the pad if it would blow up memory (odd H / tiny Nk).
    step = 128 // math.gcd(num_heads, 128)
    Nk_pad = ((Nk + step - 1) // step) * step
    if Nk_pad > 4 * Nk:
        Nk_pad = Nk
    pad = Nk_pad - Nk

    key_mask = (jnp.zeros((B, Nk), bool) if mask is None
                else mask.reshape(B, Nk).astype(bool))
    if pad:
        key_mask = jnp.pad(key_mask, ((0, 0), (0, pad)), constant_values=True)
        k_in = jnp.pad(k.astype(f32), ((0, 0), (0, pad), (0, 0)))
        v_in = jnp.pad(v.astype(f32), ((0, 0), (0, pad), (0, 0)))
        kpos = jnp.pad(kv_embed.astype(f32), ((0, 0), (0, pad), (0, 0)))
    else:
        k_in, v_in, kpos = k.astype(f32), v.astype(f32), kv_embed.astype(f32)
    bias = jnp.where(key_mask, -jnp.inf, 0.0).astype(f32).reshape(B, 1, Nk_pad)

    # fold normalize_fact into the q projection; cast weights to the MXU operand dtype
    # host-side (half the DMA traffic for bf16, no per-step casts). Biases stay f32.
    wq = (params["wq"].astype(f32) * normalize_fact).astype(matmul_dtype)
    wk = params["wk"].astype(f32).astype(matmul_dtype)
    wv = params["wv"].astype(f32).astype(matmul_dtype)
    bq = (params["bq"].astype(f32) * normalize_fact).reshape(1, Dh)
    bk = params["bk"].astype(f32).reshape(1, Dh)
    bv = params["bv"].astype(f32).reshape(1, Dh)

    # flatten (B, N, D) -> (B*N, D) host-side: free, and feeds the MXU M dimension
    xq = q.astype(f32).reshape(B * Nq, Dq)
    xk = k_in.reshape(B * Nk_pad, Dq)
    xv = v_in.reshape(B * Nk_pad, Dq)
    pq = q_embed.astype(f32).reshape(B * Nq, Dq)
    pk = kpos.reshape(B * Nk_pad, Dq)

    vmem_cap = _tpu_vmem_bytes()
    vmem_budget = max(8 << 20, int(vmem_cap * 0.6))     # leave headroom for Mosaic scratch
    vmem_limit = int(vmem_cap * 0.75)
    if bt is None:
        bt = _pick_batch_tile(B, Nq, Nk_pad, Dq, Dh, num_heads, vmem_budget)
    assert B % bt == 0, "batch tile must divide batch"
    grid = (B // bt,)

    # NOTE: the six grid-invariant weight/bias specs could use pipeline_mode=pl.Buffered(1)
    # to halve their VMEM footprint; omitted for compile portability across jax versions.
    rep2 = lambda shape: pl.BlockSpec(shape, lambda b: (0, 0))
    in_specs = [
        pl.BlockSpec((bt * Nq, Dq), lambda b: (b, 0)),            # q rows
        pl.BlockSpec((bt * Nk_pad, Dq), lambda b: (b, 0)),        # k rows (padded)
        pl.BlockSpec((bt * Nk_pad, Dq), lambda b: (b, 0)),        # v rows (padded)
        pl.BlockSpec((bt * Nq, Dq), lambda b: (b, 0)),            # q_embed rows
        pl.BlockSpec((bt * Nk_pad, Dq), lambda b: (b, 0)),        # kv_embed rows (padded)
        pl.BlockSpec((bt, 1, Nk_pad), lambda b: (b, 0, 0)),       # mask bias
        rep2((Dq, Dh)), rep2((1, Dh)),                            # wq (scaled), bq (scaled)
        rep2((Dq, Dh)), rep2((1, Dh)),                            # wk, bk
        rep2((Dq, Dh)), rep2((1, Dh)),                            # wv, bv
    ]
    out_specs = (
        pl.BlockSpec((bt, Nq, num_heads * Nk_pad), lambda b: (b, 0, 0)),   # softmaxed weights
        pl.BlockSpec((bt, Nq, num_heads * Nk_pad), lambda b: (b, 0, 0)),   # raw weights
        pl.BlockSpec((bt, Nq, Dh), lambda b: (b, 0, 0)),                   # attended values
    )
    out_shape = (
        jax.ShapeDtypeStruct((B, Nq, num_heads * Nk_pad), f32),
        jax.ShapeDtypeStruct((B, Nq, num_heads * Nk_pad), f32),
        jax.ShapeDtypeStruct((B, Nq, Dh), f32),
    )

    op_bytes = jnp.dtype(matmul_dtype).itemsize
    flops = 2 * B * (Nq + 2 * Nk_pad) * Dq * Dh + 4 * B * Nq * Nk_pad * Dh
    bytes_accessed = (4 * (B * (2 * Nq + 3 * Nk_pad) * Dq + B * Nk_pad + 3 * Dh
                           + B * Nq * (2 * num_heads * Nk_pad + Dh))
                      + op_bytes * 3 * Dq * Dh)
    cost = pl.CostEstimate(flops=int(flops),
                           transcendentals=int(B * Nq * num_heads * Nk_pad),
                           bytes_accessed=int(bytes_accessed))

    w_flat, raw_flat, res_flat = pl.pallas_call(
        functools.partial(mha_map_kernel, num_heads=num_heads, matmul_dtype=matmul_dtype),
        out_shape=out_shape,
        grid_spec=pltpu.PrefetchScalarGridSpec(
            num_scalar_prefetch=0,
            grid=grid,
            in_specs=in_specs,
            out_specs=out_specs,
        ),
        compiler_params=pltpu.CompilerParams(
            dimension_semantics=("parallel",),     # batch tiles independent (2 TCs on v7x)
            vmem_limit_bytes=vmem_limit),
        cost_estimate=cost,
    )(xq, xk, xv, pq, pk, bias, wq, bq, wk, bk, wv, bv)

    # wrapper-side reshape (+ pad slice) back to the module's 4-D output layout
    weights = w_flat.reshape(B, Nq, num_heads, Nk_pad)[..., :Nk]
    weights_raw = raw_flat.reshape(B, Nq, num_heads, Nk_pad)[..., :Nk]
    result = res_flat.reshape(B, Nq, num_heads, hd)
    return weights, result, weights_raw


# ----------------------------------------------------------------------------
# Pure-JAX reference (mirrors the PyTorch forward exactly) for correctness.
# ----------------------------------------------------------------------------
def ref_mha_map(q, k, v, params, num_heads, q_embed, kv_embed, mask):
    B, Nq, _ = q.shape
    Nk = k.shape[1]
    Dh = params["wq"].shape[1]
    hd = Dh // num_heads
    nf = float(Dh / num_heads) ** (-0.5)
    qp = (q + q_embed.reshape(q.shape)) @ params["wq"] + params["bq"]
    kp = (k + kv_embed.reshape(k.shape)) @ params["wk"] + params["bk"]
    qh = qp.reshape(B, Nq, num_heads, hd)
    kh = kp.reshape(B, Nk, num_heads, hd)
    w = jnp.einsum('bqnc,bknc->bqnk', qh * nf, kh)
    if mask is not None:
        w = jnp.where(mask[:, None, None, :], -jnp.inf, w)
    w_raw = w
    w_sm = jax.nn.softmax(w, axis=-1)
    vp = v @ params["wv"] + params["bv"]
    vh = vp.reshape(B, Nk, num_heads, hd)
    res = jnp.einsum('bqnk,bknc->bqnc', w_sm, vh)
    return w_sm, res, w_raw


def make_params(key, query_dim, hidden_dim):
    kq, kk, kv = jax.random.split(key, 3)

    def xavier(kr, shape):
        bound = float(np.sqrt(6.0 / (shape[0] + shape[1])))
        return jax.random.uniform(kr, shape, jnp.float32, -bound, bound)

    zeros = lambda: jnp.zeros((hidden_dim,), jnp.float32)      # module zeroes biases
    return {"wq": xavier(kq, (query_dim, hidden_dim)), "bq": zeros(),
            "wk": xavier(kk, (query_dim, hidden_dim)), "bk": zeros(),
            "wv": xavier(kv, (query_dim, hidden_dim)), "bv": zeros()}


if __name__ == "__main__":
    B, Nq, Nk = 2, 8, 16
    query_dim, hidden_dim, num_heads = 32, 32, 4

    root = jax.random.PRNGKey(0)
    ks = jax.random.split(root, 7)
    q = jax.random.normal(ks[0], (B, Nq, query_dim), jnp.float32)
    k = jax.random.normal(ks[1], (B, Nk, query_dim), jnp.float32)
    v = jax.random.normal(ks[2], (B, Nk, query_dim), jnp.float32)
    q_embed = jax.random.normal(ks[3], (B, Nq, query_dim), jnp.float32)
    kv_embed = jax.random.normal(ks[4], (B, Nk, query_dim), jnp.float32)
    mask = jax.random.bernoulli(ks[5], 0.25, (B, Nk))
    mask = mask.at[:, 0].set(False)   # keep >=1 visible key per row (all-masked -> NaN, as in torch)

    params = make_params(ks[6], query_dim, hidden_dim)

    # exact-numerics path (f32 MXU operands): tight check against the reference
    w32, r32, raw32 = mh_attention_map(q, k, v, params, num_heads, q_embed=q_embed,
                                       kv_embed=kv_embed, mask=mask,
                                       matmul_dtype=jnp.float32)
    # default fast path (bf16 MXU operands, f32 accumulation): sanity check
    wbf, rbf, rawbf = mh_attention_map(q, k, v, params, num_heads, q_embed=q_embed,
                                       kv_embed=kv_embed, mask=mask)
    w32, r32, raw32, wbf, rbf, rawbf = jax.block_until_ready(
        (w32, r32, raw32, wbf, rbf, rawbf))

    ref_w, ref_res, ref_raw = ref_mha_map(q, k, v, params, num_heads, q_embed, kv_embed, mask)

    assert wbf.shape == (B, Nq, num_heads, Nk)
    assert rbf.shape == (B, Nq, num_heads, hidden_dim // num_heads)
    assert rawbf.shape == (B, Nq, num_heads, Nk)

    # f32 path: exact module numerics
    np.testing.assert_allclose(np.asarray(w32), np.asarray(ref_w), rtol=2e-4, atol=1e-5)
    np.testing.assert_allclose(np.asarray(r32), np.asarray(ref_res), rtol=2e-4, atol=2e-4)
    np.testing.assert_allclose(np.asarray(raw32), np.asarray(ref_raw), rtol=2e-4, atol=2e-4)
    # bf16 path: operands rounded to bf16 (f32 accumulate) -> loose tolerance
    np.testing.assert_allclose(np.asarray(wbf), np.asarray(ref_w), rtol=2e-1, atol=1.5e-1)
    np.testing.assert_allclose(np.asarray(rbf), np.asarray(ref_res), rtol=2e-1, atol=1.5e-1)
    np.testing.assert_allclose(np.asarray(rawbf), np.asarray(ref_raw), rtol=2e-1, atol=1.5e-1)
    print("KERNEL_OK")
</pallas_src>

<mosaic_0001>
module attributes {stable_mosaic.version = 11 : i64} {
  func.func @mha_map_kernel(%arg0: i32, %arg1: memref<8x32xf32, #tpu.memory_space<vmem>>, %arg2: memref<32x32xf32, #tpu.memory_space<vmem>>, %arg3: memref<32x32xf32, #tpu.memory_space<vmem>>, %arg4: memref<8x32xf32, #tpu.memory_space<vmem>>, %arg5: memref<32x32xf32, #tpu.memory_space<vmem>>, %arg6: memref<1x1x32xf32, #tpu.memory_space<vmem>>, %arg7: memref<32x32xf32, #tpu.memory_space<vmem>>, %arg8: memref<1x32xf32, #tpu.memory_space<vmem>>, %arg9: memref<32x32xf32, #tpu.memory_space<vmem>>, %arg10: memref<1x32xf32, #tpu.memory_space<vmem>>, %arg11: memref<32x32xf32, #tpu.memory_space<vmem>>, %arg12: memref<1x32xf32, #tpu.memory_space<vmem>>, %arg13: memref<1x8x128xf32, #tpu.memory_space<vmem>>, %arg14: memref<1x8x128xf32, #tpu.memory_space<vmem>>, %arg15: memref<1x8x32xf32, #tpu.memory_space<vmem>>) attributes {dimension_semantics = [#tpu.dimension_semantics<parallel>], iteration_bounds = array<i64: 2>, scalar_prefetch = 0 : i64, scratch_operands = 0 : i64, tpu.core_type = #tpu.core_type<tc>, window_params = [{transform_indices = @transform_0, window_bounds = array<i64: 8, 32>}, {transform_indices = @transform_1, window_bounds = array<i64: 32, 32>}, {transform_indices = @transform_2, window_bounds = array<i64: 32, 32>}, {transform_indices = @transform_3, window_bounds = array<i64: 8, 32>}, {transform_indices = @transform_4, window_bounds = array<i64: 32, 32>}, {transform_indices = @transform_5, window_bounds = array<i64: 1, 1, 32>}, {pipeline_mode = #tpu.pipeline_mode<synchronous>, transform_indices = @transform_6, window_bounds = array<i64: 32, 32>}, {pipeline_mode = #tpu.pipeline_mode<synchronous>, transform_indices = @transform_7, window_bounds = array<i64: 1, 32>}, {pipeline_mode = #tpu.pipeline_mode<synchronous>, transform_indices = @transform_8, window_bounds = array<i64: 32, 32>}, {pipeline_mode = #tpu.pipeline_mode<synchronous>, transform_indices = @transform_9, window_bounds = array<i64: 1, 32>}, {pipeline_mode = #tpu.pipeline_mode<synchronous>, transform_indices = @transform_10, window_bounds = array<i64: 32, 32>}, {pipeline_mode = #tpu.pipeline_mode<synchronous>, transform_indices = @transform_11, window_bounds = array<i64: 1, 32>}, {transform_indices = @transform_12, window_bounds = array<i64: 1, 8, 128>}, {transform_indices = @transform_13, window_bounds = array<i64: 1, 8, 128>}, {transform_indices = @transform_14, window_bounds = array<i64: 1, 8, 32>}]} {
    %c0 = arith.constant 0 : index
    %c0_0 = arith.constant 0 : index
    %0 = vector.load %arg1[%c0, %c0_0] : memref<8x32xf32, #tpu.memory_space<vmem>>, vector<8x32xf32>
    %c0_1 = arith.constant 0 : index
    %c0_2 = arith.constant 0 : index
    %1 = vector.load %arg4[%c0_1, %c0_2] : memref<8x32xf32, #tpu.memory_space<vmem>>, vector<8x32xf32>
    %2 = arith.addf %0, %1 : vector<8x32xf32>
    %c0_3 = arith.constant 0 : index
    %c0_4 = arith.constant 0 : index
    %3 = vector.load %arg2[%c0_3, %c0_4] : memref<32x32xf32, #tpu.memory_space<vmem>>, vector<32x32xf32>
    %c0_5 = arith.constant 0 : index
    %c0_6 = arith.constant 0 : index
    %4 = vector.load %arg5[%c0_5, %c0_6] : memref<32x32xf32, #tpu.memory_space<vmem>>, vector<32x32xf32>
    %5 = arith.addf %3, %4 : vector<32x32xf32>
    %c0_7 = arith.constant 0 : index
    %c0_8 = arith.constant 0 : index
    %6 = vector.load %arg3[%c0_7, %c0_8] : memref<32x32xf32, #tpu.memory_space<vmem>>, vector<32x32xf32>
    %c0_9 = arith.constant 0 : index
    %c0_10 = arith.constant 0 : index
    %7 = vector.load %arg7[%c0_9, %c0_10] : memref<32x32xf32, #tpu.memory_space<vmem>>, vector<32x32xf32>
    %cst = arith.constant dense<0.000000e+00> : vector<8x32xf32>
    %8 = tpu.matmul %2, %7, %cst {dimension_numbers = #tpu.dot_dimension_numbers<[1], [0], [0], [1], [0, 0, 1, 1], [], []>} : vector<8x32xf32>, vector<32x32xf32>, vector<8x32xf32> -> vector<8x32xf32>
    %c0_11 = arith.constant 0 : index
    %c0_12 = arith.constant 0 : index
    %9 = vector.load %arg8[%c0_11, %c0_12] : memref<1x32xf32, #tpu.memory_space<vmem>>, vector<1x32xf32>
    %10 = vector.broadcast %9 : vector<1x32xf32> to vector<8x32xf32>
    %11 = arith.addf %8, %10 : vector<8x32xf32>
    %c0_13 = arith.constant 0 : index
    %c0_14 = arith.constant 0 : index
    %12 = vector.load %arg9[%c0_13, %c0_14] : memref<32x32xf32, #tpu.memory_space<vmem>>, vector<32x32xf32>
    %cst_15 = arith.constant dense<0.000000e+00> : vector<32x32xf32>
    %13 = tpu.matmul %5, %12, %cst_15 {dimension_numbers = #tpu.dot_dimension_numbers<[1], [0], [0], [1], [0, 0, 1, 1], [], []>} : vector<32x32xf32>, vector<32x32xf32>, vector<32x32xf32> -> vector<32x32xf32>
    %c0_16 = arith.constant 0 : index
    %c0_17 = arith.constant 0 : index
    %14 = vector.load %arg10[%c0_16, %c0_17] : memref<1x32xf32, #tpu.memory_space<vmem>>, vector<1x32xf32>
    %15 = vector.broadcast %14 : vector<1x32xf32> to vector<32x32xf32>
    %16 = arith.addf %13, %15 : vector<32x32xf32>
    %c0_18 = arith.constant 0 : index
    %c0_19 = arith.constant 0 : index
    %17 = vector.load %arg11[%c0_18, %c0_19] : memref<32x32xf32, #tpu.memory_space<vmem>>, vector<32x32xf32>
    %cst_20 = arith.constant dense<0.000000e+00> : vector<32x32xf32>
    %18 = tpu.matmul %6, %17, %cst_20 {dimension_numbers = #tpu.dot_dimension_numbers<[1], [0], [0], [1], [0, 0, 1, 1], [], []>} : vector<32x32xf32>, vector<32x32xf32>, vector<32x32xf32> -> vector<32x32xf32>
    %c0_21 = arith.constant 0 : index
    %c0_22 = arith.constant 0 : index
    %19 = vector.load %arg12[%c0_21, %c0_22] : memref<1x32xf32, #tpu.memory_space<vmem>>, vector<1x32xf32>
    %20 = vector.broadcast %19 : vector<1x32xf32> to vector<32x32xf32>
    %21 = arith.addf %18, %20 : vector<32x32xf32>
    %c0_23 = arith.constant 0 : index
    %c0_24 = arith.constant 0 : index
    %c0_25 = arith.constant 0 : index
    %22 = vector.load %arg6[%c0_23, %c0_24, %c0_25] : memref<1x1x32xf32, #tpu.memory_space<vmem>>, vector<1x1x32xf32>
    %23 = vector.shape_cast %22 : vector<1x1x32xf32> to vector<1x1x32xf32>
    %24 = vector.broadcast %23 : vector<1x1x32xf32> to vector<1x8x32xf32>
    %25 = vector.extract_strided_slice %11 {offsets = [0, 0], sizes = [8, 8], strides = [1, 1]} : vector<8x32xf32> to vector<8x8xf32>
    %26 = vector.shape_cast %25 : vector<8x8xf32> to vector<1x8x8xf32>
    %27 = vector.extract_strided_slice %16 {offsets = [0, 0], sizes = [32, 8], strides = [1, 1]} : vector<32x32xf32> to vector<32x8xf32>
    %28 = vector.shape_cast %27 : vector<32x8xf32> to vector<1x32x8xf32>
    %29 = vector.extract_strided_slice %21 {offsets = [0, 0], sizes = [32, 8], strides = [1, 1]} : vector<32x32xf32> to vector<32x8xf32>
    %30 = vector.shape_cast %29 : vector<32x8xf32> to vector<1x32x8xf32>
    "tpu.trace_start"() <{level = 10 : i32, message = "bqc,bkc->bqk"}> : () -> ()
    %cst_26 = arith.constant dense<0.000000e+00> : vector<1x8x32xf32>
    %31 = tpu.matmul %26, %28, %cst_26 {dimension_numbers = #tpu.dot_dimension_numbers<[2], [2], [1], [1], [0, 0, 0, 1, 1, 1], [0], [0]>} : vector<1x8x8xf32>, vector<1x32x8xf32>, vector<1x8x32xf32> -> vector<1x8x32xf32>
    "tpu.trace_stop"() : () -> ()
    %32 = arith.addf %31, %24 : vector<1x8x32xf32>
    %c0_27 = arith.constant 0 : index
    %c0_28 = arith.constant 0 : index
    %c0_29 = arith.constant 0 : index
    %33 = vector.load %arg14[%c0_27, %c0_28, %c0_29] : memref<1x8x128xf32, #tpu.memory_space<vmem>>, vector<1x8x32xf32>
    tpu.vector_store %arg14[%c0_27, %c0_28, %c0_29], %32 {strides = array<i32>} : memref<1x8x128xf32, #tpu.memory_space<vmem>>, vector<1x8x32xf32>,
    %cst_30 = arith.constant dense<0xFF800000> : vector<1x8xf32>
    %34 = vector.multi_reduction <maximumf>, %32, %cst_30 [2] : vector<1x8x32xf32> to vector<1x8xf32>
    %35 = vector.shape_cast %34 : vector<1x8xf32> to vector<1x8x1xf32>
    %36 = vector.broadcast %35 : vector<1x8x1xf32> to vector<1x8x32xf32>
    %37 = arith.subf %32, %36 : vector<1x8x32xf32>
    %38 = math.exp %37 : vector<1x8x32xf32>
    %cst_31 = arith.constant dense<0.000000e+00> : vector<1x8xf32>
    %39 = vector.multi_reduction <add>, %38, %cst_31 [2] : vector<1x8x32xf32> to vector<1x8xf32>
    %40 = vector.shape_cast %39 : vector<1x8xf32> to vector<1x8x1xf32>
    %41 = vector.broadcast %40 : vector<1x8x1xf32> to vector<1x8x32xf32>
    %42 = arith.divf %38, %41 : vector<1x8x32xf32>
    %c0_32 = arith.constant 0 : index
    %c0_33 = arith.constant 0 : index
    %c0_34 = arith.constant 0 : index
    %43 = vector.load %arg13[%c0_32, %c0_33, %c0_34] : memref<1x8x128xf32, #tpu.memory_space<vmem>>, vector<1x8x32xf32>
    tpu.vector_store %arg13[%c0_32, %c0_33, %c0_34], %42 {strides = array<i32>} : memref<1x8x128xf32, #tpu.memory_space<vmem>>, vector<1x8x32xf32>,
    "tpu.trace_start"() <{level = 10 : i32, message = "bqk,bkc->bqc"}> : () -> ()
    %cst_35 = arith.constant dense<0.000000e+00> : vector<1x8x8xf32>
    %44 = tpu.matmul %42, %30, %cst_35 {dimension_numbers = #tpu.dot_dimension_numbers<[2], [1], [1], [2], [0, 0, 0, 1, 1, 2], [0], [0]>} : vector<1x8x32xf32>, vector<1x32x8xf32>, vector<1x8x8xf32> -> vector<1x8x8xf32>
    "tpu.trace_stop"() : () -> ()
    %c0_36 = arith.constant 0 : index
    %c0_37 = arith.constant 0 : index
    %c0_38 = arith.constant 0 : index
    %45 = vector.load %arg15[%c0_36, %c0_37, %c0_38] : memref<1x8x32xf32, #tpu.memory_space<vmem>>, vector<1x8x8xf32>
    tpu.vector_store %arg15[%c0_36, %c0_37, %c0_38], %44 {strides = array<i32>} : memref<1x8x32xf32, #tpu.memory_space<vmem>>, vector<1x8x8xf32>,
    %46 = vector.extract_strided_slice %11 {offsets = [0, 8], sizes = [8, 8], strides = [1, 1]} : vector<8x32xf32> to vector<8x8xf32>
    %47 = vector.shape_cast %46 : vector<8x8xf32> to vector<1x8x8xf32>
    %48 = vector.extract_strided_slice %16 {offsets = [0, 8], sizes = [32, 8], strides = [1, 1]} : vector<32x32xf32> to vector<32x8xf32>
    %49 = vector.shape_cast %48 : vector<32x8xf32> to vector<1x32x8xf32>
    %50 = vector.extract_strided_slice %21 {offsets = [0, 8], sizes = [32, 8], strides = [1, 1]} : vector<32x32xf32> to vector<32x8xf32>
    %51 = vector.shape_cast %50 : vector<32x8xf32> to vector<1x32x8xf32>
    "tpu.trace_start"() <{level = 10 : i32, message = "bqc,bkc->bqk"}> : () -> ()
    %cst_39 = arith.constant dense<0.000000e+00> : vector<1x8x32xf32>
    %52 = tpu.matmul %47, %49, %cst_39 {dimension_numbers = #tpu.dot_dimension_numbers<[2], [2], [1], [1], [0, 0, 0, 1, 1, 1], [0], [0]>} : vector<1x8x8xf32>, vector<1x32x8xf32>, vector<1x8x32xf32> -> vector<1x8x32xf32>
    "tpu.trace_stop"() : () -> ()
    %53 = arith.addf %52, %24 : vector<1x8x32xf32>
    %c0_40 = arith.constant 0 : index
    %c0_41 = arith.constant 0 : index
    %c32 = arith.constant 32 : index
    %54 = vector.load %arg14[%c0_40, %c0_41, %c32] : memref<1x8x128xf32, #tpu.memory_space<vmem>>, vector<1x8x32xf32>
    tpu.vector_store %arg14[%c0_40, %c0_41, %c32], %53 {strides = array<i32>} : memref<1x8x128xf32, #tpu.memory_space<vmem>>, vector<1x8x32xf32>,
    %cst_42 = arith.constant dense<0xFF800000> : vector<1x8xf32>
    %55 = vector.multi_reduction <maximumf>, %53, %cst_42 [2] : vector<1x8x32xf32> to vector<1x8xf32>
    %56 = vector.shape_cast %55 : vector<1x8xf32> to vector<1x8x1xf32>
    %57 = vector.broadcast %56 : vector<1x8x1xf32> to vector<1x8x32xf32>
    %58 = arith.subf %53, %57 : vector<1x8x32xf32>
    %59 = math.exp %58 : vector<1x8x32xf32>
    %cst_43 = arith.constant dense<0.000000e+00> : vector<1x8xf32>
    %60 = vector.multi_reduction <add>, %59, %cst_43 [2] : vector<1x8x32xf32> to vector<1x8xf32>
    %61 = vector.shape_cast %60 : vector<1x8xf32> to vector<1x8x1xf32>
    %62 = vector.broadcast %61 : vector<1x8x1xf32> to vector<1x8x32xf32>
    %63 = arith.divf %59, %62 : vector<1x8x32xf32>
    %c0_44 = arith.constant 0 : index
    %c0_45 = arith.constant 0 : index
    %c32_46 = arith.constant 32 : index
    %64 = vector.load %arg13[%c0_44, %c0_45, %c32_46] : memref<1x8x128xf32, #tpu.memory_space<vmem>>, vector<1x8x32xf32>
    tpu.vector_store %arg13[%c0_44, %c0_45, %c32_46], %63 {strides = array<i32>} : memref<1x8x128xf32, #tpu.memory_space<vmem>>, vector<1x8x32xf32>,
    "tpu.trace_start"() <{level = 10 : i32, message = "bqk,bkc->bqc"}> : () -> ()
    %cst_47 = arith.constant dense<0.000000e+00> : vector<1x8x8xf32>
    %65 = tpu.matmul %63, %51, %cst_47 {dimension_numbers = #tpu.dot_dimension_numbers<[2], [1], [1], [2], [0, 0, 0, 1, 1, 2], [0], [0]>} : vector<1x8x32xf32>, vector<1x32x8xf32>, vector<1x8x8xf32> -> vector<1x8x8xf32>
    "tpu.trace_stop"() : () -> ()
    %c0_48 = arith.constant 0 : index
    %c0_49 = arith.constant 0 : index
    %c8 = arith.constant 8 : index
    %66 = vector.load %arg15[%c0_48, %c0_49, %c8] : memref<1x8x32xf32, #tpu.memory_space<vmem>>, vector<1x8x8xf32>
    tpu.vector_store %arg15[%c0_48, %c0_49, %c8], %65 {strides = array<i32>} : memref<1x8x32xf32, #tpu.memory_space<vmem>>, vector<1x8x8xf32>,
    %67 = vector.extract_strided_slice %11 {offsets = [0, 16], sizes = [8, 8], strides = [1, 1]} : vector<8x32xf32> to vector<8x8xf32>
    %68 = vector.shape_cast %67 : vector<8x8xf32> to vector<1x8x8xf32>
    %69 = vector.extract_strided_slice %16 {offsets = [0, 16], sizes = [32, 8], strides = [1, 1]} : vector<32x32xf32> to vector<32x8xf32>
    %70 = vector.shape_cast %69 : vector<32x8xf32> to vector<1x32x8xf32>
    %71 = vector.extract_strided_slice %21 {offsets = [0, 16], sizes = [32, 8], strides = [1, 1]} : vector<32x32xf32> to vector<32x8xf32>
    %72 = vector.shape_cast %71 : vector<32x8xf32> to vector<1x32x8xf32>
    "tpu.trace_start"() <{level = 10 : i32, message = "bqc,bkc->bqk"}> : () -> ()
    %cst_50 = arith.constant dense<0.000000e+00> : vector<1x8x32xf32>
    %73 = tpu.matmul %68, %70, %cst_50 {dimension_numbers = #tpu.dot_dimension_numbers<[2], [2], [1], [1], [0, 0, 0, 1, 1, 1], [0], [0]>} : vector<1x8x8xf32>, vector<1x32x8xf32>, vector<1x8x32xf32> -> vector<1x8x32xf32>
    "tpu.trace_stop"() : () -> ()
    %74 = arith.addf %73, %24 : vector<1x8x32xf32>
    %c0_51 = arith.constant 0 : index
    %c0_52 = arith.constant 0 : index
    %c64 = arith.constant 64 : index
    %75 = vector.load %arg14[%c0_51, %c0_52, %c64] : memref<1x8x128xf32, #tpu.memory_space<vmem>>, vector<1x8x32xf32>
    tpu.vector_store %arg14[%c0_51, %c0_52, %c64], %74 {strides = array<i32>} : memref<1x8x128xf32, #tpu.memory_space<vmem>>, vector<1x8x32xf32>,
    %cst_53 = arith.constant dense<0xFF800000> : vector<1x8xf32>
    %76 = vector.multi_reduction <maximumf>, %74, %cst_53 [2] : vector<1x8x32xf32> to vector<1x8xf32>
    %77 = vector.shape_cast %76 : vector<1x8xf32> to vector<1x8x1xf32>
    %78 = vector.broadcast %77 : vector<1x8x1xf32> to vector<1x8x32xf32>
    %79 = arith.subf %74, %78 : vector<1x8x32xf32>
    %80 = math.exp %79 : vector<1x8x32xf32>
    %cst_54 = arith.constant dense<0.000000e+00> : vector<1x8xf32>
    %81 = vector.multi_reduction <add>, %80, %cst_54 [2] : vector<1x8x32xf32> to vector<1x8xf32>
    %82 = vector.shape_cast %81 : vector<1x8xf32> to vector<1x8x1xf32>
    %83 = vector.broadcast %82 : vector<1x8x1xf32> to vector<1x8x32xf32>
    %84 = arith.divf %80, %83 : vector<1x8x32xf32>
    %c0_55 = arith.constant 0 : index
    %c0_56 = arith.constant 0 : index
    %c64_57 = arith.constant 64 : index
    %85 = vector.load %arg13[%c0_55, %c0_56, %c64_57] : memref<1x8x128xf32, #tpu.memory_space<vmem>>, vector<1x8x32xf32>
    tpu.vector_store %arg13[%c0_55, %c0_56, %c64_57], %84 {strides = array<i32>} : memref<1x8x128xf32, #tpu.memory_space<vmem>>, vector<1x8x32xf32>,
    "tpu.trace_start"() <{level = 10 : i32, message = "bqk,bkc->bqc"}> : () -> ()
    %cst_58 = arith.constant dense<0.000000e+00> : vector<1x8x8xf32>
    %86 = tpu.matmul %84, %72, %cst_58 {dimension_numbers = #tpu.dot_dimension_numbers<[2], [1], [1], [2], [0, 0, 0, 1, 1, 2], [0], [0]>} : vector<1x8x32xf32>, vector<1x32x8xf32>, vector<1x8x8xf32> -> vector<1x8x8xf32>
    "tpu.trace_stop"() : () -> ()
    %c0_59 = arith.constant 0 : index
    %c0_60 = arith.constant 0 : index
    %c16 = arith.constant 16 : index
    %87 = vector.load %arg15[%c0_59, %c0_60, %c16] : memref<1x8x32xf32, #tpu.memory_space<vmem>>, vector<1x8x8xf32>
    tpu.vector_store %arg15[%c0_59, %c0_60, %c16], %86 {strides = array<i32>} : memref<1x8x32xf32, #tpu.memory_space<vmem>>, vector<1x8x8xf32>,
    %88 = vector.extract_strided_slice %11 {offsets = [0, 24], sizes = [8, 8], strides = [1, 1]} : vector<8x32xf32> to vector<8x8xf32>
    %89 = vector.shape_cast %88 : vector<8x8xf32> to vector<1x8x8xf32>
    %90 = vector.extract_strided_slice %16 {offsets = [0, 24], sizes = [32, 8], strides = [1, 1]} : vector<32x32xf32> to vector<32x8xf32>
    %91 = vector.shape_cast %90 : vector<32x8xf32> to vector<1x32x8xf32>
    %92 = vector.extract_strided_slice %21 {offsets = [0, 24], sizes = [32, 8], strides = [1, 1]} : vector<32x32xf32> to vector<32x8xf32>
    %93 = vector.shape_cast %92 : vector<32x8xf32> to vector<1x32x8xf32>
    "tpu.trace_start"() <{level = 10 : i32, message = "bqc,bkc->bqk"}> : () -> ()
    %cst_61 = arith.constant dense<0.000000e+00> : vector<1x8x32xf32>
    %94 = tpu.matmul %89, %91, %cst_61 {dimension_numbers = #tpu.dot_dimension_numbers<[2], [2], [1], [1], [0, 0, 0, 1, 1, 1], [0], [0]>} : vector<1x8x8xf32>, vector<1x32x8xf32>, vector<1x8x32xf32> -> vector<1x8x32xf32>
    "tpu.trace_stop"() : () -> ()
    %95 = arith.addf %94, %24 : vector<1x8x32xf32>
    %c0_62 = arith.constant 0 : index
    %c0_63 = arith.constant 0 : index
    %c96 = arith.constant 96 : index
    %96 = vector.load %arg14[%c0_62, %c0_63, %c96] : memref<1x8x128xf32, #tpu.memory_space<vmem>>, vector<1x8x32xf32>
    tpu.vector_store %arg14[%c0_62, %c0_63, %c96], %95 {strides = array<i32>} : memref<1x8x128xf32, #tpu.memory_space<vmem>>, vector<1x8x32xf32>,
    %cst_64 = arith.constant dense<0xFF800000> : vector<1x8xf32>
    %97 = vector.multi_reduction <maximumf>, %95, %cst_64 [2] : vector<1x8x32xf32> to vector<1x8xf32>
    %98 = vector.shape_cast %97 : vector<1x8xf32> to vector<1x8x1xf32>
    %99 = vector.broadcast %98 : vector<1x8x1xf32> to vector<1x8x32xf32>
    %100 = arith.subf %95, %99 : vector<1x8x32xf32>
    %101 = math.exp %100 : vector<1x8x32xf32>
    %cst_65 = arith.constant dense<0.000000e+00> : vector<1x8xf32>
    %102 = vector.multi_reduction <add>, %101, %cst_65 [2] : vector<1x8x32xf32> to vector<1x8xf32>
    %103 = vector.shape_cast %102 : vector<1x8xf32> to vector<1x8x1xf32>
    %104 = vector.broadcast %103 : vector<1x8x1xf32> to vector<1x8x32xf32>
    %105 = arith.divf %101, %104 : vector<1x8x32xf32>
    %c0_66 = arith.constant 0 : index
    %c0_67 = arith.constant 0 : index
    %c96_68 = arith.constant 96 : index
    %106 = vector.load %arg13[%c0_66, %c0_67, %c96_68] : memref<1x8x128xf32, #tpu.memory_space<vmem>>, vector<1x8x32xf32>
    tpu.vector_store %arg13[%c0_66, %c0_67, %c96_68], %105 {strides = array<i32>} : memref<1x8x128xf32, #tpu.memory_space<vmem>>, vector<1x8x32xf32>,
    "tpu.trace_start"() <{level = 10 : i32, message = "bqk,bkc->bqc"}> : () -> ()
    %cst_69 = arith.constant dense<0.000000e+00> : vector<1x8x8xf32>
    %107 = tpu.matmul %105, %93, %cst_69 {dimension_numbers = #tpu.dot_dimension_numbers<[2], [1], [1], [2], [0, 0, 0, 1, 1, 2], [0], [0]>} : vector<1x8x32xf32>, vector<1x32x8xf32>, vector<1x8x8xf32> -> vector<1x8x8xf32>
    "tpu.trace_stop"() : () -> ()
    %c0_70 = arith.constant 0 : index
    %c0_71 = arith.constant 0 : index
    %c24 = arith.constant 24 : index
    %108 = vector.load %arg15[%c0_70, %c0_71, %c24] : memref<1x8x32xf32, #tpu.memory_space<vmem>>, vector<1x8x8xf32>
    tpu.vector_store %arg15[%c0_70, %c0_71, %c24], %107 {strides = array<i32>} : memref<1x8x32xf32, #tpu.memory_space<vmem>>, vector<1x8x8xf32>,
    return
  }
  func.func @transform_0(%arg0: i32) -> (i32, i32) {
    %c0_i32 = arith.constant 0 : i32
    %c0_i32_0 = arith.constant 0 : i32
    return %arg0, %c0_i32 : i32, i32
  }
  func.func @transform_1(%arg0: i32) -> (i32, i32) {
    %c0_i32 = arith.constant 0 : i32
    %c0_i32_0 = arith.constant 0 : i32
    return %arg0, %c0_i32 : i32, i32
  }
  func.func @transform_2(%arg0: i32) -> (i32, i32) {
    %c0_i32 = arith.constant 0 : i32
    %c0_i32_0 = arith.constant 0 : i32
    return %arg0, %c0_i32 : i32, i32
  }
  func.func @transform_3(%arg0: i32) -> (i32, i32) {
    %c0_i32 = arith.constant 0 : i32
    %c0_i32_0 = arith.constant 0 : i32
    return %arg0, %c0_i32 : i32, i32
  }
  func.func @transform_4(%arg0: i32) -> (i32, i32) {
    %c0_i32 = arith.constant 0 : i32
    %c0_i32_0 = arith.constant 0 : i32
    return %arg0, %c0_i32 : i32, i32
  }
  func.func @transform_5(%arg0: i32) -> (i32, i32, i32) {
    %c0_i32 = arith.constant 0 : i32
    %c0_i32_0 = arith.constant 0 : i32
    %c0_i32_1 = arith.constant 0 : i32
    return %arg0, %c0_i32, %c0_i32_0 : i32, i32, i32
  }
  func.func @transform_6(%arg0: i32) -> (i32, i32) {
    %c0_i32 = arith.constant 0 : i32
    %c0_i32_0 = arith.constant 0 : i32
    %c0_i32_1 = arith.constant 0 : i32
    return %c0_i32, %c0_i32_0 : i32, i32
  }
  func.func @transform_7(%arg0: i32) -> (i32, i32) {
    %c0_i32 = arith.constant 0 : i32
    %c0_i32_0 = arith.constant 0 : i32
    %c0_i32_1 = arith.constant 0 : i32
    return %c0_i32, %c0_i32_0 : i32, i32
  }
  func.func @transform_8(%arg0: i32) -> (i32, i32) {
    %c0_i32 = arith.constant 0 : i32
    %c0_i32_0 = arith.constant 0 : i32
    %c0_i32_1 = arith.constant 0 : i32
    return %c0_i32, %c0_i32_0 : i32, i32
  }
  func.func @transform_9(%arg0: i32) -> (i32, i32) {
    %c0_i32 = arith.constant 0 : i32
    %c0_i32_0 = arith.constant 0 : i32
    %c0_i32_1 = arith.constant 0 : i32
    return %c0_i32, %c0_i32_0 : i32, i32
  }
  func.func @transform_10(%arg0: i32) -> (i32, i32) {
    %c0_i32 = arith.constant 0 : i32
    %c0_i32_0 = arith.constant 0 : i32
    %c0_i32_1 = arith.constant 0 : i32
    return %c0_i32, %c0_i32_0 : i32, i32
  }
  func.func @transform_11(%arg0: i32) -> (i32, i32) {
    %c0_i32 = arith.constant 0 : i32
    %c0_i32_0 = arith.constant 0 : i32
    %c0_i32_1 = arith.constant 0 : i32
    return %c0_i32, %c0_i32_0 : i32, i32
  }
  func.func @transform_12(%arg0: i32) -> (i32, i32, i32) {
    %c0_i32 = arith.constant 0 : i32
    %c0_i32_0 = arith.constant 0 : i32
    %c0_i32_1 = arith.constant 0 : i32
    return %arg0, %c0_i32, %c0_i32_0 : i32, i32, i32
  }
  func.func @transform_13(%arg0: i32) -> (i32, i32, i32) {
    %c0_i32 = arith.constant 0 : i32
    %c0_i32_0 = arith.constant 0 : i32
    %c0_i32_1 = arith.constant 0 : i32
    return %arg0, %c0_i32, %c0_i32_0 : i32, i32, i32
  }
  func.func @transform_14(%arg0: i32) -> (i32, i32, i32) {
    %c0_i32 = arith.constant 0 : i32
    %c0_i32_0 = arith.constant 0 : i32
    %c0_i32_1 = arith.constant 0 : i32
    return %arg0, %c0_i32, %c0_i32_0 : i32, i32, i32
  }
}

</mosaic_0001>

<llo_original>
// kernel: tpu_custom_call.1
$region0: #{tpu_custom_call.1}
  #allocation0 [shape = 'u32[]', space=smem, size = 0x4, offset = 0x4, fixed_abs, tag = 'smem constant byte address 0x4 - core index']
  #allocation1 [shape = 'u32[144,128]{1,0:T(1,128)}', space=vmem, size = 0x12000, scoped, tag = 'internal scratch']
  %s0 = inlined_call_operand.vmem [shape: f32[16,32], index: 0, kind: input, shape index: {}]
  %s1 = inlined_call_operand.vmem [shape: f32[64,32], index: 1, kind: input, shape index: {}]
  %s2 = inlined_call_operand.vmem [shape: f32[64,32], index: 2, kind: input, shape index: {}]
  %s3 = inlined_call_operand.vmem [shape: f32[16,32], index: 3, kind: input, shape index: {}]
  %s4 = inlined_call_operand.vmem [shape: f32[64,32], index: 4, kind: input, shape index: {}]
  %s5 = inlined_call_operand.vmem [shape: f32[2,1,32], index: 5, kind: input, shape index: {}]
  %s6 = inlined_call_operand.vmem [shape: f32[32,32], index: 6, kind: input, shape index: {}]
  %s7 = inlined_call_operand.vmem [shape: f32[1,32], index: 7, kind: input, shape index: {}]
  %s8 = inlined_call_operand.vmem [shape: f32[32,32], index: 8, kind: input, shape index: {}]
  %s9 = inlined_call_operand.vmem [shape: f32[1,32], index: 9, kind: input, shape index: {}]
  %s10 = inlined_call_operand.vmem [shape: f32[32,32], index: 10, kind: input, shape index: {}]
  %s11 = inlined_call_operand.vmem [shape: f32[1,32], index: 11, kind: input, shape index: {}]
  %s12 = inlined_call_operand.hbm [shape: f32[2,8,128], index: 12, kind: output, shape index: {0}]
  %s13 = inlined_call_operand.hbm [shape: f32[2,8,128], index: 13, kind: output, shape index: {1}]
  %s14 = inlined_call_operand.hbm [shape: f32[2,8,32], index: 14, kind: output, shape index: {2}]
  %15 = xla_tuple %s12, %s13, %s14
  %s16 = sld [smem:[#allocation0]]
  $region97: #{tpu_custom_call.1} parent=0
    _
  %s18 = ssub.s32 1, %s16
  %s19 = scalar_select 0, %s18, %s16
  $region1: #{tpu_custom_call.1} parent=0
    #allocation2 [shape = 'u8[8192]{0}', space=vmem, size = 0x2000, scoped, tag = 'output window, operand 0']
    #allocation3 [shape = 's32[2]{0}', space=sflag, size = 0x8, scoped, tag = 'scoped memory for tpu_custom_call.1']
    #allocation4 [shape = 'u8[8192]{0}', space=vmem, size = 0x2000, scoped, tag = 'output window, operand 1']
    #allocation5 [shape = 's32[2]{0}', space=sflag, size = 0x8, scoped, tag = 'scoped memory for tpu_custom_call.1']
    #allocation6 [shape = 'u8[8192]{0}', space=vmem, size = 0x2000, scoped, tag = 'output window, operand 2']
    %20 = vsyncpa [#allocation3], 0
    %s21 = scalar_lea.sflag [#allocation3], 1
    %22 = vsyncpa %s21, 0
    %23 = vsyncpa [#allocation5], 0
    %s24 = scalar_lea.sflag [#allocation5], 1
    %25 = vsyncpa %s24, 0
    loop: start=0, step=1, limit=4
    $region2: #{tpu_custom_call.1} parent=1 // loop_pre_header
      _
    $region3: #{tpu_custom_call.1} parent=1 // loop_header
      %s27 = sphi 0, %s31
      %p28 = scmp.ge.s32.totalorder %s27, 4
      %s37 = sphi 0, %s39
      %s40 = sphi 0, %s37
      %s41 = sphi 0, %s40
      %s57 = sphi 0, %s41
      %s63 = sphi 0, %s65
      %s66 = sphi 0, %s63
      %s67 = sphi 0, %s66
      %s83 = sphi 0, %s67
      %s89 = sphi 0, %s91
      %s92 = sphi 0, %s89
      %s93 = sphi 0, %s92
      %s109 = sphi 0, %s93
      %s115 = sphi 0, %s117
      %s118 = sphi 0, %s115
      %s119 = sphi 0, %s118
      %s135 = sphi 0, %s119
      %s141 = sphi 0, %s143
      %s144 = sphi 0, %s141
      %s145 = sphi 0, %s144
      %s161 = sphi 0, %s145
      %s167 = sphi 0, %s169
      %s170 = sphi 0, %s167
      %s171 = sphi 0, %s170
      %s187 = sphi 0, %s171
      %s191 = sphi 0, %s191
      %s193 = sphi 0, %s191
      %s194 = sphi 0, %s193
      %s208 = sphi 0, %s194
      %s212 = sphi 0, %s212
      %s214 = sphi 0, %s212
      %s215 = sphi 0, %s214
      %s229 = sphi 0, %s215
      %s233 = sphi 0, %s233
      %s235 = sphi 0, %s233
      %s236 = sphi 0, %s235
      %s250 = sphi 0, %s236
      %s254 = sphi 0, %s254
      %s256 = sphi 0, %s254
      %s257 = sphi 0, %s256
      %s271 = sphi 0, %s257
      %s275 = sphi 0, %s275
      %s277 = sphi 0, %s275
      %s278 = sphi 0, %s277
      %s292 = sphi 0, %s278
      %s296 = sphi 0, %s296
      %s298 = sphi 0, %s296
      %s299 = sphi 0, %s298
      %s313 = sphi 0, %s299
      %s319 = sphi 0, %s321
      %s322 = sphi 0, %s319
      %s323 = sphi 0, %s322
      %s339 = sphi 0, %s323
      %s345 = sphi 0, %s347
      %s348 = sphi 0, %s345
      %s349 = sphi 0, %s348
      %s365 = sphi 0, %s349
      %s371 = sphi 0, %s373
      %s374 = sphi 0, %s371
      %s375 = sphi 0, %s374
      %s391 = sphi 0, %s375
    $region4: #{tpu_custom_call.1} parent=1 // loop_header_branch
      %30 = sbr.rel (%p28) target = $region8
    $region5: #{tpu_custom_call.1} parent=1 // loop_body
      %s32 = ssub.s32 %s27, 1
      %s33 = ssub.s32 %s27, 2
      %s34 = sadd.s32 %s27, 1
      %s35 = ssub.s32 %s27, %s34
      %p36 = scmp.eq.s32.totalorder %s35, 0
      %s38 = sadd.s32 %s37, 1
      %s39 = scalar_select %p36, %s37, %s38
      %p42 = pneg %p36
      %p43 = scmp.eq.s32.totalorder %s27, 1
      %p44 = por %p42, %p43
      %p45 = scmp.ne.s32.totalorder %s37, %s40
      %p46 = scmp.eq.s32.totalorder %s27, 0
      %p47 = por %p45, %p46
      %p48 = scmp.ne.s32.totalorder %s37, %s40
      %p49 = scmp.eq.s32.totalorder %s32, 1
      %p50 = por %p48, %p49
      %p51 = scmp.ne.s32.totalorder %s40, %s41
      %p52 = scmp.eq.s32.totalorder %s32, 0
      %p53 = por %p51, %p52
      %p54 = scmp.ne.s32.totalorder %s40, %s41
      %p55 = scmp.eq.s32.totalorder %s33, 1
      %p56 = por %p54, %p55
      %p58 = scmp.ne.s32.totalorder %s41, %s57
      %p59 = scmp.eq.s32.totalorder %s33, 0
      %p60 = por %p58, %p59
      %s61 = ssub.s32 %s27, %s34
      %p62 = scmp.eq.s32.totalorder %s61, 0
      %s64 = sadd.s32 %s63, 1
      %s65 = scalar_select %p62, %s63, %s64
      %p68 = pneg %p62
      %p69 = scmp.eq.s32.totalorder %s27, 1
      %p70 = por %p68, %p69
      %p71 = scmp.ne.s32.totalorder %s63, %s66
      %p72 = scmp.eq.s32.totalorder %s27, 0
      %p73 = por %p71, %p72
      %p74 = scmp.ne.s32.totalorder %s63, %s66
      %p75 = scmp.eq.s32.totalorder %s32, 1
      %p76 = por %p74, %p75
      %p77 = scmp.ne.s32.totalorder %s66, %s67
      %p78 = scmp.eq.s32.totalorder %s32, 0
      %p79 = por %p77, %p78
      %p80 = scmp.ne.s32.totalorder %s66, %s67
      %p81 = scmp.eq.s32.totalorder %s33, 1
      %p82 = por %p80, %p81
      %p84 = scmp.ne.s32.totalorder %s67, %s83
      %p85 = scmp.eq.s32.totalorder %s33, 0
      %p86 = por %p84, %p85
      %s87 = ssub.s32 %s27, %s34
      %p88 = scmp.eq.s32.totalorder %s87, 0
      %s90 = sadd.s32 %s89, 1
      %s91 = scalar_select %p88, %s89, %s90
      %p94 = pneg %p88
      %p95 = scmp.eq.s32.totalorder %s27, 1
      %p96 = por %p94, %p95
      %p97 = scmp.ne.s32.totalorder %s89, %s92
      %p98 = scmp.eq.s32.totalorder %s27, 0
      %p99 = por %p97, %p98
      %p100 = scmp.ne.s32.totalorder %s89, %s92
      %p101 = scmp.eq.s32.totalorder %s32, 1
      %p102 = por %p100, %p101
      %p103 = scmp.ne.s32.totalorder %s92, %s93
      %p104 = scmp.eq.s32.totalorder %s32, 0
      %p105 = por %p103, %p104
      %p106 = scmp.ne.s32.totalorder %s92, %s93
      %p107 = scmp.eq.s32.totalorder %s33, 1
      %p108 = por %p106, %p107
      %p110 = scmp.ne.s32.totalorder %s93, %s109
      %p111 = scmp.eq.s32.totalorder %s33, 0
      %p112 = por %p110, %p111
      %s113 = ssub.s32 %s27, %s34
      %p114 = scmp.eq.s32.totalorder %s113, 0
      %s116 = sadd.s32 %s115, 1
      %s117 = scalar_select %p114, %s115, %s116
      %p120 = pneg %p114
      %p121 = scmp.eq.s32.totalorder %s27, 1
      %p122 = por %p120, %p121
      %p123 = scmp.ne.s32.totalorder %s115, %s118
      %p124 = scmp.eq.s32.totalorder %s27, 0
      %p125 = por %p123, %p124
      %p126 = scmp.ne.s32.totalorder %s115, %s118
      %p127 = scmp.eq.s32.totalorder %s32, 1
      %p128 = por %p126, %p127
      %p129 = scmp.ne.s32.totalorder %s118, %s119
      %p130 = scmp.eq.s32.totalorder %s32, 0
      %p131 = por %p129, %p130
      %p132 = scmp.ne.s32.totalorder %s118, %s119
      %p133 = scmp.eq.s32.totalorder %s33, 1
      %p134 = por %p132, %p133
      %p136 = scmp.ne.s32.totalorder %s119, %s135
      %p137 = scmp.eq.s32.totalorder %s33, 0
      %p138 = por %p136, %p137
      %s139 = ssub.s32 %s27, %s34
      %p140 = scmp.eq.s32.totalorder %s139, 0
      %s142 = sadd.s32 %s141, 1
      %s143 = scalar_select %p140, %s141, %s142
      %p146 = pneg %p140
      %p147 = scmp.eq.s32.totalorder %s27, 1
      %p148 = por %p146, %p147
      %p149 = scmp.ne.s32.totalorder %s141, %s144
      %p150 = scmp.eq.s32.totalorder %s27, 0
      %p151 = por %p149, %p150
      %p152 = scmp.ne.s32.totalorder %s141, %s144
      %p153 = scmp.eq.s32.totalorder %s32, 1
      %p154 = por %p152, %p153
      %p155 = scmp.ne.s32.totalorder %s144, %s145
      %p156 = scmp.eq.s32.totalorder %s32, 0
      %p157 = por %p155, %p156
      %p158 = scmp.ne.s32.totalorder %s144, %s145
      %p159 = scmp.eq.s32.totalorder %s33, 1
      %p160 = por %p158, %p159
      %p162 = scmp.ne.s32.totalorder %s145, %s161
      %p163 = scmp.eq.s32.totalorder %s33, 0
      %p164 = por %p162, %p163
      %s165 = ssub.s32 %s27, %s34
      %p166 = scmp.eq.s32.totalorder %s165, 0
      %s168 = sadd.s32 %s167, 1
      %s169 = scalar_select %p166, %s167, %s168
      %p172 = pneg %p166
      %p173 = scmp.eq.s32.totalorder %s27, 1
      %p174 = por %p172, %p173
      %p175 = scmp.ne.s32.totalorder %s167, %s170
      %p176 = scmp.eq.s32.totalorder %s27, 0
      %p177 = por %p175, %p176
      %p178 = scmp.ne.s32.totalorder %s167, %s170
      %p179 = scmp.eq.s32.totalorder %s32, 1
      %p180 = por %p178, %p179
      %p181 = scmp.ne.s32.totalorder %s170, %s171
      %p182 = scmp.eq.s32.totalorder %s32, 0
      %p183 = por %p181, %p182
      %p184 = scmp.ne.s32.totalorder %s170, %s171
      %p185 = scmp.eq.s32.totalorder %s33, 1
      %p186 = por %p184, %p185
      %p188 = scmp.ne.s32.totalorder %s171, %s187
      %p189 = scmp.eq.s32.totalorder %s33, 0
      %p190 = por %p188, %p189
      %s192 = sadd.s32 %s191, 1
      %p195 = scmp.eq.s32.totalorder %s27, 1
      %p196 = scmp.ne.s32.totalorder %s191, %s193
      %p197 = scmp.eq.s32.totalorder %s27, 0
      %p198 = por %p196, %p197
      %p199 = scmp.ne.s32.totalorder %s191, %s193
      %p200 = scmp.eq.s32.totalorder %s32, 1
      %p201 = por %p199, %p200
      %p202 = scmp.ne.s32.totalorder %s193, %s194
      %p203 = scmp.eq.s32.totalorder %s32, 0
      %p204 = por %p202, %p203
      %p205 = scmp.ne.s32.totalorder %s193, %s194
      %p206 = scmp.eq.s32.totalorder %s33, 1
      %p207 = por %p205, %p206
      %p209 = scmp.ne.s32.totalorder %s194, %s208
      %p210 = scmp.eq.s32.totalorder %s33, 0
      %p211 = por %p209, %p210
      %s213 = sadd.s32 %s212, 1
      %p216 = scmp.eq.s32.totalorder %s27, 1
      %p217 = scmp.ne.s32.totalorder %s212, %s214
      %p218 = scmp.eq.s32.totalorder %s27, 0
      %p219 = por %p217, %p218
      %p220 = scmp.ne.s32.totalorder %s212, %s214
      %p221 = scmp.eq.s32.totalorder %s32, 1
      %p222 = por %p220, %p221
      %p223 = scmp.ne.s32.totalorder %s214, %s215
      %p224 = scmp.eq.s32.totalorder %s32, 0
      %p225 = por %p223, %p224
      %p226 = scmp.ne.s32.totalorder %s214, %s215
      %p227 = scmp.eq.s32.totalorder %s33, 1
      %p228 = por %p226, %p227
      %p230 = scmp.ne.s32.totalorder %s215, %s229
      %p231 = scmp.eq.s32.totalorder %s33, 0
      %p232 = por %p230, %p231
      %s234 = sadd.s32 %s233, 1
      %p237 = scmp.eq.s32.totalorder %s27, 1
      %p238 = scmp.ne.s32.totalorder %s233, %s235
      %p239 = scmp.eq.s32.totalorder %s27, 0
      %p240 = por %p238, %p239
      %p241 = scmp.ne.s32.totalorder %s233, %s235
      %p242 = scmp.eq.s32.totalorder %s32, 1
      %p243 = por %p241, %p242
      %p244 = scmp.ne.s32.totalorder %s235, %s236
      %p245 = scmp.eq.s32.totalorder %s32, 0
      %p246 = por %p244, %p245
      %p247 = scmp.ne.s32.totalorder %s235, %s236
      %p248 = scmp.eq.s32.totalorder %s33, 1
      %p249 = por %p247, %p248
      %p251 = scmp.ne.s32.totalorder %s236, %s250
      %p252 = scmp.eq.s32.totalorder %s33, 0
      %p253 = por %p251, %p252
      %s255 = sadd.s32 %s254, 1
      %p258 = scmp.eq.s32.totalorder %s27, 1
      %p259 = scmp.ne.s32.totalorder %s254, %s256
      %p260 = scmp.eq.s32.totalorder %s27, 0
      %p261 = por %p259, %p260
      %p262 = scmp.ne.s32.totalorder %s254, %s256
      %p263 = scmp.eq.s32.totalorder %s32, 1
      %p264 = por %p262, %p263
      %p265 = scmp.ne.s32.totalorder %s256, %s257
      %p266 = scmp.eq.s32.totalorder %s32, 0
      %p267 = por %p265, %p266
      %p268 = scmp.ne.s32.totalorder %s256, %s257
      %p269 = scmp.eq.s32.totalorder %s33, 1
      %p270 = por %p268, %p269
      %p272 = scmp.ne.s32.totalorder %s257, %s271
      %p273 = scmp.eq.s32.totalorder %s33, 0
      %p274 = por %p272, %p273
      %s276 = sadd.s32 %s275, 1
      %p279 = scmp.eq.s32.totalorder %s27, 1
      %p280 = scmp.ne.s32.totalorder %s275, %s277
      %p281 = scmp.eq.s32.totalorder %s27, 0
      %p282 = por %p280, %p281
      %p283 = scmp.ne.s32.totalorder %s275, %s277
      %p284 = scmp.eq.s32.totalorder %s32, 1
      %p285 = por %p283, %p284
      %p286 = scmp.ne.s32.totalorder %s277, %s278
      %p287 = scmp.eq.s32.totalorder %s32, 0
      %p288 = por %p286, %p287
      %p289 = scmp.ne.s32.totalorder %s277, %s278
      %p290 = scmp.eq.s32.totalorder %s33, 1
      %p291 = por %p289, %p290
      %p293 = scmp.ne.s32.totalorder %s278, %s292
      %p294 = scmp.eq.s32.totalorder %s33, 0
      %p295 = por %p293, %p294
      %s297 = sadd.s32 %s296, 1
      %p300 = scmp.eq.s32.totalorder %s27, 1
      %p301 = scmp.ne.s32.totalorder %s296, %s298
      %p302 = scmp.eq.s32.totalorder %s27, 0
      %p303 = por %p301, %p302
      %p304 = scmp.ne.s32.totalorder %s296, %s298
      %p305 = scmp.eq.s32.totalorder %s32, 1
      %p306 = por %p304, %p305
      %p307 = scmp.ne.s32.totalorder %s298, %s299
      %p308 = scmp.eq.s32.totalorder %s32, 0
      %p309 = por %p307, %p308
      %p310 = scmp.ne.s32.totalorder %s298, %s299
      %p311 = scmp.eq.s32.totalorder %s33, 1
      %p312 = por %p310, %p311
      %p314 = scmp.ne.s32.totalorder %s299, %s313
      %p315 = scmp.eq.s32.totalorder %s33, 0
      %p316 = por %p314, %p315
      %s317 = ssub.s32 %s27, %s34
      %p318 = scmp.eq.s32.totalorder %s317, 0
      %s320 = sadd.s32 %s319, 1
      %s321 = scalar_select %p318, %s319, %s320
      %p324 = pneg %p318
      %p325 = scmp.eq.s32.totalorder %s27, 1
      %p326 = por %p324, %p325
      %p327 = scmp.ne.s32.totalorder %s319, %s322
      %p328 = scmp.eq.s32.totalorder %s27, 0
      %p329 = por %p327, %p328
      %p330 = scmp.ne.s32.totalorder %s319, %s322
      %p331 = scmp.eq.s32.totalorder %s32, 1
      %p332 = por %p330, %p331
      %p333 = scmp.ne.s32.totalorder %s322, %s323
      %p334 = scmp.eq.s32.totalorder %s32, 0
      %p335 = por %p333, %p334
      %p336 = scmp.ne.s32.totalorder %s322, %s323
      %p337 = scmp.eq.s32.totalorder %s33, 1
      %p338 = por %p336, %p337
      %p340 = scmp.ne.s32.totalorder %s323, %s339
      %p341 = scmp.eq.s32.totalorder %s33, 0
      %p342 = por %p340, %p341
      %s343 = ssub.s32 %s27, %s34
      %p344 = scmp.eq.s32.totalorder %s343, 0
      %s346 = sadd.s32 %s345, 1
      %s347 = scalar_select %p344, %s345, %s346
      %p350 = pneg %p344
      %p351 = scmp.eq.s32.totalorder %s27, 1
      %p352 = por %p350, %p351
      %p353 = scmp.ne.s32.totalorder %s345, %s348
      %p354 = scmp.eq.s32.totalorder %s27, 0
      %p355 = por %p353, %p354
      %p356 = scmp.ne.s32.totalorder %s345, %s348
      %p357 = scmp.eq.s32.totalorder %s32, 1
      %p358 = por %p356, %p357
      %p359 = scmp.ne.s32.totalorder %s348, %s349
      %p360 = scmp.eq.s32.totalorder %s32, 0
      %p361 = por %p359, %p360
      %p362 = scmp.ne.s32.totalorder %s348, %s349
      %p363 = scmp.eq.s32.totalorder %s33, 1
      %p364 = por %p362, %p363
      %p366 = scmp.ne.s32.totalorder %s349, %s365
      %p367 = scmp.eq.s32.totalorder %s33, 0
      %p368 = por %p366, %p367
      %s369 = ssub.s32 %s27, %s34
      %p370 = scmp.eq.s32.totalorder %s369, 0
      %s372 = sadd.s32 %s371, 1
      %s373 = scalar_select %p370, %s371, %s372
      %p376 = pneg %p370
      %p377 = scmp.eq.s32.totalorder %s27, 1
      %p378 = por %p376, %p377
      %p379 = scmp.ne.s32.totalorder %s371, %s374
      %p380 = scmp.eq.s32.totalorder %s27, 0
      %p381 = por %p379, %p380
      %p382 = scmp.ne.s32.totalorder %s371, %s374
      %p383 = scmp.eq.s32.totalorder %s32, 1
      %p384 = por %p382, %p383
      %p385 = scmp.ne.s32.totalorder %s374, %s375
      %p386 = scmp.eq.s32.totalorder %s32, 0
      %p387 = por %p385, %p386
      %p388 = scmp.ne.s32.totalorder %s374, %s375
      %p389 = scmp.eq.s32.totalorder %s33, 1
      %p390 = por %p388, %p389
      %p392 = scmp.ne.s32.totalorder %s375, %s391
      %p393 = scmp.eq.s32.totalorder %s33, 0
      %p394 = por %p392, %p393
      %p395 = scmp.le.s32.totalorder 1, %s27
      %p396 = scmp.lt.s32.totalorder %s27, 3
      %p397 = pnand %p395, %p396
      %p398 = pneg %p397
      // Predicated region
      $region9: #{tpu_custom_call.1} parent=5 // pred_check
        _
      $region10: #{tpu_custom_call.1} parent=5 // pred_check_branch
        %400 = sbr.rel (%p397) target = $region12
      $region11: #{tpu_custom_call.1} parent=5 // pred_region
        %s401 = ssub.s32 %s27, 1
        // Predicated region
        $region13: #{tpu_custom_call.1} parent=11 // pred_check
          %p402 = pneg %p204
        $region14: #{tpu_custom_call.1} parent=11 // pred_check_branch
          %404 = sbr.rel (%p402) target = $region16
        $region15: #{tpu_custom_call.1} parent=11 // pred_region
          _
        $region16: #{tpu_custom_call.1} parent=11 // pred_fallthru
          _
        // Predicated region
        $region17: #{tpu_custom_call.1} parent=11 // pred_check
          %p405 = pneg %p225
        $region18: #{tpu_custom_call.1} parent=11 // pred_check_branch
          %407 = sbr.rel (%p405) target = $region20
        $region19: #{tpu_custom_call.1} parent=11 // pred_region
          _
        $region20: #{tpu_custom_call.1} parent=11 // pred_fallthru
          _
        // Predicated region
        $region21: #{tpu_custom_call.1} parent=11 // pred_check
          %p408 = pneg %p246
        $region22: #{tpu_custom_call.1} parent=11 // pred_check_branch
          %410 = sbr.rel (%p408) target = $region24
        $region23: #{tpu_custom_call.1} parent=11 // pred_region
          _
        $region24: #{tpu_custom_call.1} parent=11 // pred_fallthru
          _
        // Predicated region
        $region25: #{tpu_custom_call.1} parent=11 // pred_check
          %p411 = pneg %p267
        $region26: #{tpu_custom_call.1} parent=11 // pred_check_branch
          %413 = sbr.rel (%p411) target = $region28
        $region27: #{tpu_custom_call.1} parent=11 // pred_region
          _
        $region28: #{tpu_custom_call.1} parent=11 // pred_fallthru
          _
        // Predicated region
        $region29: #{tpu_custom_call.1} parent=11 // pred_check
          %p414 = pneg %p288
        $region30: #{tpu_custom_call.1} parent=11 // pred_check_branch
          %416 = sbr.rel (%p414) target = $region32
        $region31: #{tpu_custom_call.1} parent=11 // pred_region
          _
        $region32: #{tpu_custom_call.1} parent=11 // pred_fallthru
          _
        // Predicated region
        $region33: #{tpu_custom_call.1} parent=11 // pred_check
          %p417 = pneg %p309
        $region34: #{tpu_custom_call.1} parent=11 // pred_check_branch
          %419 = sbr.rel (%p417) target = $region36
        $region35: #{tpu_custom_call.1} parent=11 // pred_region
          _
        $region36: #{tpu_custom_call.1} parent=11 // pred_fallthru
          _
      $region12: #{tpu_custom_call.1} parent=5 // pred_fallthru
        _
      %p420 = scmp.lt.s32.totalorder %s27, 2
      // Predicated region
      $region37: #{tpu_custom_call.1} parent=5 // pred_check
        %p421 = pneg %p420
      $region38: #{tpu_custom_call.1} parent=5 // pred_check_branch
        %423 = sbr.rel (%p421) target = $region40
      $region39: #{tpu_custom_call.1} parent=5 // pred_region
        // Predicated region
        $region41: #{tpu_custom_call.1} parent=39 // pred_check
          %p424 = pneg %p47
        $region42: #{tpu_custom_call.1} parent=39 // pred_check_branch
          %426 = sbr.rel (%p424) target = $region44
        $region43: #{tpu_custom_call.1} parent=39 // pred_region
          %p427 = scmp.lt.s32.totalorder %s27, 1
          %s428 = scalar_select %p427, %s27, 1
          %s429 = smul.addr %s428, 8
          %s430 = scalar_lea.vmem %s0, %s429
        $region44: #{tpu_custom_call.1} parent=39 // pred_fallthru
          _
        // Predicated region
        $region45: #{tpu_custom_call.1} parent=39 // pred_check
          %p431 = pneg %p73
        $region46: #{tpu_custom_call.1} parent=39 // pred_check_branch
          %433 = sbr.rel (%p431) target = $region48
        $region47: #{tpu_custom_call.1} parent=39 // pred_region
          %s434 = smul.u32 4, %s27
          %p435 = scmp.lt.s32.totalorder %s434, 7
          %s436 = scalar_select %p435, %s434, 7
          %s437 = smul.addr %s436, 8
          %s438 = scalar_lea.vmem %s1, %s437
          %s439 = smul.u32 4, %s27
        $region48: #{tpu_custom_call.1} parent=39 // pred_fallthru
          _
        // Predicated region
        $region49: #{tpu_custom_call.1} parent=39 // pred_check
          %p440 = pneg %p99
        $region50: #{tpu_custom_call.1} parent=39 // pred_check_branch
          %442 = sbr.rel (%p440) target = $region52
        $region51: #{tpu_custom_call.1} parent=39 // pred_region
          %s443 = smul.u32 4, %s27
          %p444 = scmp.lt.s32.totalorder %s443, 7
          %s445 = scalar_select %p444, %s443, 7
          %s446 = smul.addr %s445, 8
          %s447 = scalar_lea.vmem %s2, %s446
          %s448 = smul.u32 4, %s27
        $region52: #{tpu_custom_call.1} parent=39 // pred_fallthru
          _
        // Predicated region
        $region53: #{tpu_custom_call.1} parent=39 // pred_check
          %p449 = pneg %p125
        $region54: #{tpu_custom_call.1} parent=39 // pred_check_branch
          %451 = sbr.rel (%p449) target = $region56
        $region55: #{tpu_custom_call.1} parent=39 // pred_region
          %p452 = scmp.lt.s32.totalorder %s27, 1
          %s453 = scalar_select %p452, %s27, 1
          %s454 = smul.addr %s453, 8
          %s455 = scalar_lea.vmem %s3, %s454
        $region56: #{tpu_custom_call.1} parent=39 // pred_fallthru
          _
        // Predicated region
        $region57: #{tpu_custom_call.1} parent=39 // pred_check
          %p456 = pneg %p151
        $region58: #{tpu_custom_call.1} parent=39 // pred_check_branch
          %458 = sbr.rel (%p456) target = $region60
        $region59: #{tpu_custom_call.1} parent=39 // pred_region
          %s459 = smul.u32 4, %s27
          %p460 = scmp.lt.s32.totalorder %s459, 7
          %s461 = scalar_select %p460, %s459, 7
          %s462 = smul.addr %s461, 8
          %s463 = scalar_lea.vmem %s4, %s462
          %s464 = smul.u32 4, %s27
        $region60: #{tpu_custom_call.1} parent=39 // pred_fallthru
          _
        // Predicated region
        $region61: #{tpu_custom_call.1} parent=39 // pred_check
          %p465 = pneg %p177
        $region62: #{tpu_custom_call.1} parent=39 // pred_check_branch
          %467 = sbr.rel (%p465) target = $region64
        $region63: #{tpu_custom_call.1} parent=39 // pred_region
          %p468 = scmp.lt.s32.totalorder %s27, 1
          %s469 = scalar_select %p468, %s27, 1
          %s470 = scalar_lea.vmem %s5, %s469
        $region64: #{tpu_custom_call.1} parent=39 // pred_fallthru
          _
      $region40: #{tpu_custom_call.1} parent=5 // pred_fallthru
        _
      %p471 = scmp.le.s32.totalorder 1, %s27
      %p472 = scmp.lt.s32.totalorder %s27, 3
      %p473 = pnand %p471, %p472
      %p474 = pneg %p473
      // Predicated region
      $region65: #{tpu_custom_call.1} parent=5 // pred_check
        _
      $region66: #{tpu_custom_call.1} parent=5 // pred_check_branch
        %476 = sbr.rel (%p473) target = $region68
      $region67: #{tpu_custom_call.1} parent=5 // pred_region
        %s477 = ssub.s32 %s27, 1
        %p478 = scmp.lt.s32.totalorder %s32, 1
        %s479 = scalar_select %p478, %s32, 1
        %s480 = smul.addr %s479, 8
        %s481 = scalar_lea.vmem %s0, %s480
        %p482 = pneg %p53
        %p483 = pneg %p50
        %s484 = smul.u32 4, %s32
        %p485 = scmp.lt.s32.totalorder %s484, 7
        %s486 = scalar_select %p485, %s484, 7
        %s487 = smul.addr %s486, 8
        %s488 = scalar_lea.vmem %s1, %s487
        %p489 = pneg %p79
        %p490 = pneg %p76
        %s491 = smul.u32 4, %s32
        %p492 = scmp.lt.s32.totalorder %s491, 7
        %s493 = scalar_select %p492, %s491, 7
        %s494 = smul.addr %s493, 8
        %s495 = scalar_lea.vmem %s2, %s494
        %p496 = pneg %p105
        %p497 = pneg %p102
        %p498 = scmp.lt.s32.totalorder %s32, 1
        %s499 = scalar_select %p498, %s32, 1
        %s500 = smul.addr %s499, 8
        %s501 = scalar_lea.vmem %s3, %s500
        %p502 = pneg %p131
        %p503 = pneg %p128
        %s504 = smul.u32 4, %s32
        %p505 = scmp.lt.s32.totalorder %s504, 7
        %s506 = scalar_select %p505, %s504, 7
        %s507 = smul.addr %s506, 8
        %s508 = scalar_lea.vmem %s4, %s507
        %p509 = pneg %p157
        %p510 = pneg %p154
        %p511 = scmp.lt.s32.totalorder %s32, 1
        %s512 = scalar_select %p511, %s32, 1
        %s513 = scalar_lea.vmem %s5, %s512
        %p514 = pneg %p183
        %p515 = pneg %p180
        %p516 = pneg %p204
        %p517 = pneg %p201
        %p518 = pneg %p225
        %p519 = pneg %p222
        %p520 = pneg %p246
        %p521 = pneg %p243
        %p522 = pneg %p267
        %p523 = pneg %p264
        %p524 = pneg %p288
        %p525 = pneg %p285
        %p526 = pneg %p309
        %p527 = pneg %p306
        %p528 = pneg %p335
        %p529 = pneg %p332
        %s530 = sand.u32 %s322, 1
        %s531 = scalar_lea.sflag [#allocation3], %s530
        %s532 = sand.u32 %s322, 1
        %s533 = smul.addr %s532, 8
        %s534 = scalar_lea.vmem [#allocation2], %s533
        %p535 = pneg %p361
        %p536 = pneg %p358
        %s537 = sand.u32 %s32, 1
        %s538 = scalar_lea.sflag [#allocation5], %s537
        %s539 = sand.u32 %s348, 1
        %s540 = smul.addr %s539, 8
        %s541 = scalar_lea.vmem [#allocation4], %s540
        %p542 = pneg %p387
        %p543 = pneg %p384
        %s544 = sand.u32 %s32, 1
        %s545 = scalar_lea.sflag [#allocation5], %s544
        %s546 = sand.u32 %s374, 1
        %s547 = smul.addr %s546, 8
        %s548 = scalar_lea.vmem [#allocation6], %s547
        %p549 = scmp.lt.s32.totalorder %s32, 1
        %s550 = scalar_select %p549, %s32, 1
        %s551 = smul.addr %s550, 8
        %s552 = scalar_lea.vmem %s0, %s551
        %s553 = smul.u32 4, %s32
        %p554 = scmp.lt.s32.totalorder %s553, 7
        %s555 = scalar_select %p554, %s553, 7
        %s556 = smul.addr %s555, 8
        %s557 = scalar_lea.vmem %s1, %s556
        %s558 = smul.u32 4, %s32
        %s559 = smul.u32 4, %s32
        %p560 = scmp.lt.s32.totalorder %s559, 7
        %s561 = scalar_select %p560, %s559, 7
        %s562 = smul.addr %s561, 8
        %s563 = scalar_lea.vmem %s2, %s562
        %s564 = smul.u32 4, %s32
        %p565 = scmp.lt.s32.totalorder %s32, 1
        %s566 = scalar_select %p565, %s32, 1
        %s567 = smul.addr %s566, 8
        %s568 = scalar_lea.vmem %s3, %s567
        %s569 = smul.u32 4, %s32
        %p570 = scmp.lt.s32.totalorder %s569, 7
        %s571 = scalar_select %p570, %s569, 7
        %s572 = smul.addr %s571, 8
        %s573 = scalar_lea.vmem %s4, %s572
        %s574 = smul.u32 4, %s32
        %p575 = scmp.lt.s32.totalorder %s32, 1
        %s576 = scalar_select %p575, %s32, 1
        %s577 = scalar_lea.vmem %s5, %s576
        %v578 = vld [vmem:[%s552] sm:$0xff]
        %v579 = vld [vmem:[%s568] sm:$0xff]
        %v580 = vadd.f32 %v578, %v579
        %v581 = vld [vmem:[%s557] sm:$0xff]
        %v582 = vld [vmem:[%s557 + $0x8] sm:$0xff]
        %v583 = vld [vmem:[%s557 + $0x10] sm:$0xff]
        %v584 = vld [vmem:[%s557 + $0x18] sm:$0xff]
        %v585 = vld [vmem:[%s573] sm:$0xff]
        %v586 = vld [vmem:[%s573 + $0x8] sm:$0xff]
        %v587 = vld [vmem:[%s573 + $0x10] sm:$0xff]
        %v588 = vld [vmem:[%s573 + $0x18] sm:$0xff]
        %v589 = vadd.f32 %v581, %v585
        %v590 = vadd.f32 %v582, %v586
        %v591 = vadd.f32 %v583, %v587
        %v592 = vadd.f32 %v584, %v588
        %v593 = vld [vmem:[%s563] sm:$0xff]
        %v594 = vld [vmem:[%s563 + $0x8] sm:$0xff]
        %v595 = vld [vmem:[%s563 + $0x10] sm:$0xff]
        %v596 = vld [vmem:[%s563 + $0x18] sm:$0xff]
        %v597 = vld [vmem:[%s6] sm:$0xff]
        %v598 = vld [vmem:[%s6 + $0x8] sm:$0xff]
        %v599 = vld [vmem:[%s6 + $0x10] sm:$0xff]
        %v600 = vld [vmem:[%s6 + $0x18] sm:$0xff]
        %v601 = vld [vmem:[%s7] sm:$0x1]
        %v603 = vlaneseq
        %v604 = vshrl.u32 %v603, 7
        %v605 = vsub.s32 0, %v604
        %v606 = vrot.slane %v601, %v605
        %vm608 = vcmask 261120
        %v610 = vsel %vm608, %v580, 0
        %612 = vmatprep.subr.mxu0 0.0
        %613 = vmatpush1.msra.mxu0 0.0
        %614 = vmatprep.subr.mxu0 0.0
        %615 = vmatpush1.msra.mxu0 0.0
        %616 = vmatprep.subr.mxu0 0.0
        %617 = vmatpush1.msra.mxu0 0.0
        %618 = vmatprep.subr.mxu0 0.0
        %619 = vmatpush1.msra.mxu0 0.0
        %620 = vmatprep.subr.mxu0 0.0
        %621 = vmatpush1.msra.mxu0 0.0
        %622 = vmatprep.subr.mxu0 0.0
        %623 = vmatpush1.msra.mxu0 0.0
        %624 = vmatprep.subr.mxu0 0.0
        %625 = vmatpush1.msra.mxu0 0.0
        %626 = vmatprep.subr.mxu0 0.0
        %627 = vmatpush1.msra.mxu0 0.0
        %628 = vmatprep.subr.mxu0 0.0
        %629 = vmatpush1.msra.mxu0 0.0
        %630 = vmatprep.subr.mxu0 0.0
        %631 = vmatpush1.msra.mxu0 0.0
        %632 = vmatprep.subr.mxu0 0.0
        %633 = vmatpush1.msra.mxu0 0.0
        %634 = vmatprep.subr.mxu0 0.0
        %635 = vmatpush1.msra.mxu0 0.0
        %636 = vmatprep.subr.mxu0 0.0
        %637 = vmatpush1.msra.mxu0 %v600
        %638 = vmatprep.subr.mxu0 0.0
        %639 = vmatpush1.msra.mxu0 %v599
        %640 = vmatprep.subr.mxu0 0.0
        %641 = vmatpush1.msra.mxu0 %v598
        %642 = vmatprep.subr.mxu0 0.0
        %643 = vmatpush1.msra.mxu0 %v597
        %644 = vmatprep.subr.mxu0 0.0
        %645 = vmatpush2.msra.mxu0 0.0
        %646 = vmatprep.subr.mxu0 0.0
        %647 = vmatpush2.msra.mxu0 0.0
        %648 = vmatprep.subr.mxu0 0.0
        %649 = vmatpush2.msra.mxu0 0.0
        %650 = vmatprep.subr.mxu0 0.0
        %651 = vmatpush2.msra.mxu0 0.0
        %652 = vmatprep.subr.mxu0 0.0
        %653 = vmatpush2.msra.mxu0 0.0
        %654 = vmatprep.subr.mxu0 0.0
        %655 = vmatpush2.msra.mxu0 0.0
        %656 = vmatprep.subr.mxu0 0.0
        %657 = vmatpush2.msra.mxu0 0.0
        %658 = vmatprep.subr.mxu0 0.0
        %659 = vmatpush2.msra.mxu0 0.0
        %660 = vmatprep.subr.mxu0 0.0
        %661 = vmatpush2.msra.mxu0 0.0
        %662 = vmatprep.subr.mxu0 0.0
        %663 = vmatpush2.msra.mxu0 0.0
        %664 = vmatprep.subr.mxu0 0.0
        %665 = vmatpush2.msra.mxu0 0.0
        %666 = vmatprep.subr.mxu0 0.0
        %667 = vmatpush2.msra.mxu0 0.0
        %668 = vmatprep.subr.mxu0 0.0
        %669 = vmatpush2.msra.mxu0 0.0
        %670 = vmatprep.subr.mxu0 0.0
        %671 = vmatpush2.msra.mxu0 0.0
        %672 = vmatprep.subr.mxu0 0.0
        %673 = vmatpush2.msra.mxu0 0.0
        %674 = vmatprep.subr.mxu0 0.0
        %675 = vmatpush2.msra.mxu0 0.0
        %676 = vmatprep.mubr.f32.mxu0 0.0
        %677 = vmatmul.mubr.f32.gmra.mxu0 %v610
        %v678 = vpop.f32.mrf.mxu0
        %v679 = vadd.f32 %v606, %v678
        %v680 = vpop.f32.mrf.mxu0
        %681 = vdwg.mxu0
        %v682 = vld [vmem:[%s8] sm:$0xff]
        %v683 = vld [vmem:[%s8 + $0x8] sm:$0xff]
        %v684 = vld [vmem:[%s8 + $0x10] sm:$0xff]
        %v685 = vld [vmem:[%s8 + $0x18] sm:$0xff]
        %v686 = vld [vmem:[%s9] sm:$0x1]
        %v688 = vlaneseq
        %v689 = vshrl.u32 %v688, 7
        %v690 = vsub.s32 0, %v689
        %v691 = vrot.slane %v686, %v690
        %v694 = vsel %vm608, %v589, 0
        %v697 = vsel %vm608, %v590, 0
        %v700 = vsel %vm608, %v591, 0
        %v703 = vsel %vm608, %v592, 0
        %705 = vmatprep.subr.mxu0 0.0
        %706 = vmatpush1.msra.mxu0 0.0
        %707 = vmatprep.subr.mxu0 0.0
        %708 = vmatpush1.msra.mxu0 0.0
        %709 = vmatprep.subr.mxu0 0.0
        %710 = vmatpush1.msra.mxu0 0.0
        %711 = vmatprep.subr.mxu0 0.0
        %712 = vmatpush1.msra.mxu0 0.0
        %713 = vmatprep.subr.mxu0 0.0
        %714 = vmatpush1.msra.mxu0 0.0
        %715 = vmatprep.subr.mxu0 0.0
        %716 = vmatpush1.msra.mxu0 0.0
        %717 = vmatprep.subr.mxu0 0.0
        %718 = vmatpush1.msra.mxu0 0.0
        %719 = vmatprep.subr.mxu0 0.0
        %720 = vmatpush1.msra.mxu0 0.0
        %721 = vmatprep.subr.mxu0 0.0
        %722 = vmatpush1.msra.mxu0 0.0
        %723 = vmatprep.subr.mxu0 0.0
        %724 = vmatpush1.msra.mxu0 0.0
        %725 = vmatprep.subr.mxu0 0.0
        %726 = vmatpush1.msra.mxu0 0.0
        %727 = vmatprep.subr.mxu0 0.0
        %728 = vmatpush1.msra.mxu0 0.0
        %729 = vmatprep.subr.mxu0 0.0
        %730 = vmatpush1.msra.mxu0 %v685
        %731 = vmatprep.subr.mxu0 0.0
        %732 = vmatpush1.msra.mxu0 %v684
        %733 = vmatprep.subr.mxu0 0.0
        %734 = vmatpush1.msra.mxu0 %v683
        %735 = vmatprep.subr.mxu0 0.0
        %736 = vmatpush1.msra.mxu0 %v682
        %737 = vmatprep.subr.mxu0 0.0
        %738 = vmatpush2.msra.mxu0 0.0
        %739 = vmatprep.subr.mxu0 0.0
        %740 = vmatpush2.msra.mxu0 0.0
        %741 = vmatprep.subr.mxu0 0.0
        %742 = vmatpush2.msra.mxu0 0.0
        %743 = vmatprep.subr.mxu0 0.0
        %744 = vmatpush2.msra.mxu0 0.0
        %745 = vmatprep.subr.mxu0 0.0
        %746 = vmatpush2.msra.mxu0 0.0
        %747 = vmatprep.subr.mxu0 0.0
        %748 = vmatpush2.msra.mxu0 0.0
        %749 = vmatprep.subr.mxu0 0.0
        %750 = vmatpush2.msra.mxu0 0.0
        %751 = vmatprep.subr.mxu0 0.0
        %752 = vmatpush2.msra.mxu0 0.0
        %753 = vmatprep.subr.mxu0 0.0
        %754 = vmatpush2.msra.mxu0 0.0
        %755 = vmatprep.subr.mxu0 0.0
        %756 = vmatpush2.msra.mxu0 0.0
        %757 = vmatprep.subr.mxu0 0.0
        %758 = vmatpush2.msra.mxu0 0.0
        %759 = vmatprep.subr.mxu0 0.0
        %760 = vmatpush2.msra.mxu0 0.0
        %761 = vmatprep.subr.mxu0 0.0
        %762 = vmatpush2.msra.mxu0 0.0
        %763 = vmatprep.subr.mxu0 0.0
        %764 = vmatpush2.msra.mxu0 0.0
        %765 = vmatprep.subr.mxu0 0.0
        %766 = vmatpush2.msra.mxu0 0.0
        %767 = vmatprep.subr.mxu0 0.0
        %768 = vmatpush2.msra.mxu0 0.0
        %769 = vmatprep.mubr.f32.mxu0 0.0
        %770 = vmatmul.mubr.f32.gmra.mxu0 %v694
        %v771 = vpop.f32.mrf.mxu0
        %v772 = vadd.f32 %v691, %v771
        %v773 = vpop.f32.mrf.mxu0
        %774 = vmatprep.mubr.f32.mxu0 0.0
        %775 = vmatmul.mubr.f32.gmra.mxu0 %v697
        %v776 = vpop.f32.mrf.mxu0
        %v777 = vadd.f32 %v691, %v776
        %v778 = vpop.f32.mrf.mxu0
        %779 = vmatprep.mubr.f32.mxu0 0.0
        %780 = vmatmul.mubr.f32.gmra.mxu0 %v700
        %v781 = vpop.f32.mrf.mxu0
        %v782 = vadd.f32 %v691, %v781
        %v783 = vpop.f32.mrf.mxu0
        %784 = vmatprep.mubr.f32.mxu0 0.0
        %785 = vmatmul.mubr.f32.gmra.mxu0 %v703
        %v786 = vpop.f32.mrf.mxu0
        %v787 = vadd.f32 %v691, %v786
        %v788 = vpop.f32.mrf.mxu0
        %789 = vdwg.mxu0
        %v790 = vld [vmem:[%s10] sm:$0xff]
        %v791 = vld [vmem:[%s10 + $0x8] sm:$0xff]
        %v792 = vld [vmem:[%s10 + $0x10] sm:$0xff]
        %v793 = vld [vmem:[%s10 + $0x18] sm:$0xff]
        %v794 = vld [vmem:[%s11] sm:$0x1]
        %v796 = vlaneseq
        %v797 = vshrl.u32 %v796, 7
        %v798 = vsub.s32 0, %v797
        %v799 = vrot.slane %v794, %v798
        %v802 = vsel %vm608, %v593, 0
        %v805 = vsel %vm608, %v594, 0
        %v808 = vsel %vm608, %v595, 0
        %v811 = vsel %vm608, %v596, 0
        %813 = vmatprep.subr.mxu0 0.0
        %814 = vmatpush1.msra.mxu0 0.0
        %815 = vmatprep.subr.mxu0 0.0
        %816 = vmatpush1.msra.mxu0 0.0
        %817 = vmatprep.subr.mxu0 0.0
        %818 = vmatpush1.msra.mxu0 0.0
        %819 = vmatprep.subr.mxu0 0.0
        %820 = vmatpush1.msra.mxu0 0.0
        %821 = vmatprep.subr.mxu0 0.0
        %822 = vmatpush1.msra.mxu0 0.0
        %823 = vmatprep.subr.mxu0 0.0
        %824 = vmatpush1.msra.mxu0 0.0
        %825 = vmatprep.subr.mxu0 0.0
        %826 = vmatpush1.msra.mxu0 0.0
        %827 = vmatprep.subr.mxu0 0.0
        %828 = vmatpush1.msra.mxu0 0.0
        %829 = vmatprep.subr.mxu0 0.0
        %830 = vmatpush1.msra.mxu0 0.0
        %831 = vmatprep.subr.mxu0 0.0
        %832 = vmatpush1.msra.mxu0 0.0
        %833 = vmatprep.subr.mxu0 0.0
        %834 = vmatpush1.msra.mxu0 0.0
        %835 = vmatprep.subr.mxu0 0.0
        %836 = vmatpush1.msra.mxu0 0.0
        %837 = vmatprep.subr.mxu0 0.0
        %838 = vmatpush1.msra.mxu0 %v793
        %839 = vmatprep.subr.mxu0 0.0
        %840 = vmatpush1.msra.mxu0 %v792
        %841 = vmatprep.subr.mxu0 0.0
        %842 = vmatpush1.msra.mxu0 %v791
        %843 = vmatprep.subr.mxu0 0.0
        %844 = vmatpush1.msra.mxu0 %v790
        %845 = vmatprep.subr.mxu0 0.0
        %846 = vmatpush2.msra.mxu0 0.0
        %847 = vmatprep.subr.mxu0 0.0
        %848 = vmatpush2.msra.mxu0 0.0
        %849 = vmatprep.subr.mxu0 0.0
        %850 = vmatpush2.msra.mxu0 0.0
        %851 = vmatprep.subr.mxu0 0.0
        %852 = vmatpush2.msra.mxu0 0.0
        %853 = vmatprep.subr.mxu0 0.0
        %854 = vmatpush2.msra.mxu0 0.0
        %855 = vmatprep.subr.mxu0 0.0
        %856 = vmatpush2.msra.mxu0 0.0
        %857 = vmatprep.subr.mxu0 0.0
        %858 = vmatpush2.msra.mxu0 0.0
        %859 = vmatprep.subr.mxu0 0.0
        %860 = vmatpush2.msra.mxu0 0.0
        %861 = vmatprep.subr.mxu0 0.0
        %862 = vmatpush2.msra.mxu0 0.0
        %863 = vmatprep.subr.mxu0 0.0
        %864 = vmatpush2.msra.mxu0 0.0
        %865 = vmatprep.subr.mxu0 0.0
        %866 = vmatpush2.msra.mxu0 0.0
        %867 = vmatprep.subr.mxu0 0.0
        %868 = vmatpush2.msra.mxu0 0.0
        %869 = vmatprep.subr.mxu0 0.0
        %870 = vmatpush2.msra.mxu0 0.0
        %871 = vmatprep.subr.mxu0 0.0
        %872 = vmatpush2.msra.mxu0 0.0
        %873 = vmatprep.subr.mxu0 0.0
        %874 = vmatpush2.msra.mxu0 0.0
        %875 = vmatprep.subr.mxu0 0.0
        %876 = vmatpush2.msra.mxu0 0.0
        %877 = vmatprep.mubr.f32.mxu0 0.0
        %878 = vmatmul.mubr.f32.gmra.mxu0 %v802
        %v879 = vpop.f32.mrf.mxu0
        %v880 = vadd.f32 %v799, %v879
        %v881 = vpop.f32.mrf.mxu0
        %882 = vmatprep.mubr.f32.mxu0 0.0
        %883 = vmatmul.mubr.f32.gmra.mxu0 %v805
        %v884 = vpop.f32.mrf.mxu0
        %v885 = vadd.f32 %v799, %v884
        %v886 = vpop.f32.mrf.mxu0
        %887 = vmatprep.mubr.f32.mxu0 0.0
        %888 = vmatmul.mubr.f32.gmra.mxu0 %v808
        %v889 = vpop.f32.mrf.mxu0
        %v890 = vadd.f32 %v799, %v889
        %v891 = vpop.f32.mrf.mxu0
        %892 = vmatprep.mubr.f32.mxu0 0.0
        %893 = vmatmul.mubr.f32.gmra.mxu0 %v811
        %v894 = vpop.f32.mrf.mxu0
        %v895 = vadd.f32 %v799, %v894
        %v896 = vpop.f32.mrf.mxu0
        %897 = vdwg.mxu0
        %v898 = vld [vmem:[%s577] sm:$0x1]
        %v900 = vlaneseq
        %v901 = vshrl.u32 %v900, 7
        %v902 = vsub.s32 0, %v901
        %v903 = vrot.slane %v898, %v902
        %vm905 = vcmask 64512
        %v907 = vsel %vm905, %v679, 0
        %v910 = vsel %vm905, %v772, 0
        %v913 = vsel %vm905, %v777, 0
        %v916 = vsel %vm905, %v782, 0
        %v919 = vsel %vm905, %v787, 0
        %921 = vmatprep.subr.mxu0 0.0
        %922 = vmatpush1.xpose.msra.mxu0 0.0
        %923 = vmatprep.subr.mxu0 0.0
        %924 = vmatpush1.xpose.msra.mxu0 0.0
        %925 = vmatprep.subr.mxu0 0.0
        %926 = vmatpush1.xpose.msra.mxu0 0.0
        %927 = vmatprep.subr.mxu0 0.0
        %928 = vmatpush1.xpose.msra.mxu0 0.0
        %929 = vmatprep.subr.mxu0 0.0
        %930 = vmatpush1.xpose.msra.mxu0 0.0
        %931 = vmatprep.subr.mxu0 0.0
        %932 = vmatpush1.xpose.msra.mxu0 0.0
        %933 = vmatprep.subr.mxu0 0.0
        %934 = vmatpush1.xpose.msra.mxu0 0.0
        %935 = vmatprep.subr.mxu0 0.0
        %936 = vmatpush1.xpose.msra.mxu0 0.0
        %937 = vmatprep.subr.mxu0 0.0
        %938 = vmatpush1.xpose.msra.mxu0 0.0
        %939 = vmatprep.subr.mxu0 0.0
        %940 = vmatpush1.xpose.msra.mxu0 0.0
        %941 = vmatprep.subr.mxu0 0.0
        %942 = vmatpush1.xpose.msra.mxu0 0.0
        %943 = vmatprep.subr.mxu0 0.0
        %944 = vmatpush1.xpose.msra.mxu0 0.0
        %945 = vmatprep.subr.mxu0 0.0
        %946 = vmatpush1.xpose.msra.mxu0 %v919
        %947 = vmatprep.subr.mxu0 0.0
        %948 = vmatpush1.xpose.msra.mxu0 %v916
        %949 = vmatprep.subr.mxu0 0.0
        %950 = vmatpush1.xpose.msra.mxu0 %v913
        %951 = vmatprep.subr.mxu0 0.0
        %952 = vmatpush1.xpose.msra.mxu0 %v910
        %953 = vmatprep.subr.mxu0 0.0
        %954 = vmatpush2.xpose.msra.mxu0 0.0
        %955 = vmatprep.subr.mxu0 0.0
        %956 = vmatpush2.xpose.msra.mxu0 0.0
        %957 = vmatprep.subr.mxu0 0.0
        %958 = vmatpush2.xpose.msra.mxu0 0.0
        %959 = vmatprep.subr.mxu0 0.0
        %960 = vmatpush2.xpose.msra.mxu0 0.0
        %961 = vmatprep.subr.mxu0 0.0
        %962 = vmatpush2.xpose.msra.mxu0 0.0
        %963 = vmatprep.subr.mxu0 0.0
        %964 = vmatpush2.xpose.msra.mxu0 0.0
        %965 = vmatprep.subr.mxu0 0.0
        %966 = vmatpush2.xpose.msra.mxu0 0.0
        %967 = vmatprep.subr.mxu0 0.0
        %968 = vmatpush2.xpose.msra.mxu0 0.0
        %969 = vmatprep.subr.mxu0 0.0
        %970 = vmatpush2.xpose.msra.mxu0 0.0
        %971 = vmatprep.subr.mxu0 0.0
        %972 = vmatpush2.xpose.msra.mxu0 0.0
        %973 = vmatprep.subr.mxu0 0.0
        %974 = vmatpush2.xpose.msra.mxu0 0.0
        %975 = vmatprep.subr.mxu0 0.0
        %976 = vmatpush2.xpose.msra.mxu0 0.0
        %977 = vmatprep.subr.mxu0 0.0
        %978 = vmatpush2.xpose.msra.mxu0 0.0
        %979 = vmatprep.subr.mxu0 0.0
        %980 = vmatpush2.xpose.msra.mxu0 0.0
        %981 = vmatprep.subr.mxu0 0.0
        %982 = vmatpush2.xpose.msra.mxu0 0.0
        %983 = vmatprep.subr.mxu0 0.0
        %984 = vmatpush2.xpose.msra.mxu0 0.0
        %985 = vmatprep.mubr.f32.mxu0 0.0
        %986 = vmatmul.mubr.f32.gmra.mxu0 %v907
        %v987 = vpop.f32.mrf.mxu0
        %v988 = vadd.f32 %v903, %v987
        %v989 = vpop.f32.mrf.mxu0
        %990 = vdwg.mxu0
        %991 = vst.msk [vmem:[%s541] sm:$0xff] %vm608, %v988
        %v992 = vsel %vm608, %v988, -inf
        %993 = vmax.xlane.f32.xlu0 %v992
        %v994 = vpop.xlane.xlu0 %993
        %v995 = vsub.f32 %v988, %v994
        %v996 = vmul.f32 %v995, 1.442695
        %v997 = vpow.pop %v996
        %v998 = vsel %vm608, %v997, 0.0
        %999 = vadd.xlane.f32.xlu0 %v998
        %v1000 = vpop.xlane.xlu0 %999
        %v1001 = vrcp.pop %v1000
        %v1002 = vmul.f32 %v997, %v1001
        %1003 = vst.msk [vmem:[%s534] sm:$0xff] %vm608, %v1002
        %v1005 = vsel %vm608, %v1002, 0
        %1007 = vmatprep.subr.mxu0 0.0
        %1008 = vmatpush1.msra.mxu0 0.0
        %1009 = vmatprep.subr.mxu0 0.0
        %1010 = vmatpush1.msra.mxu0 0.0
        %1011 = vmatprep.subr.mxu0 0.0
        %1012 = vmatpush1.msra.mxu0 0.0
        %1013 = vmatprep.subr.mxu0 0.0
        %1014 = vmatpush1.msra.mxu0 0.0
        %1015 = vmatprep.subr.mxu0 0.0
        %1016 = vmatpush1.msra.mxu0 0.0
        %1017 = vmatprep.subr.mxu0 0.0
        %1018 = vmatpush1.msra.mxu0 0.0
        %1019 = vmatprep.subr.mxu0 0.0
        %1020 = vmatpush1.msra.mxu0 0.0
        %1021 = vmatprep.subr.mxu0 0.0
        %1022 = vmatpush1.msra.mxu0 0.0
        %1023 = vmatprep.subr.mxu0 0.0
        %1024 = vmatpush1.msra.mxu0 0.0
        %1025 = vmatprep.subr.mxu0 0.0
        %1026 = vmatpush1.msra.mxu0 0.0
        %1027 = vmatprep.subr.mxu0 0.0
        %1028 = vmatpush1.msra.mxu0 0.0
        %1029 = vmatprep.subr.mxu0 0.0
        %1030 = vmatpush1.msra.mxu0 0.0
        %1031 = vmatprep.subr.mxu0 0.0
        %1032 = vmatpush1.msra.mxu0 %v895
        %1033 = vmatprep.subr.mxu0 0.0
        %1034 = vmatpush1.msra.mxu0 %v890
        %1035 = vmatprep.subr.mxu0 0.0
        %1036 = vmatpush1.msra.mxu0 %v885
        %1037 = vmatprep.subr.mxu0 0.0
        %1038 = vmatpush1.msra.mxu0 %v880
        %1039 = vmatprep.subr.mxu0 0.0
        %1040 = vmatpush2.msra.mxu0 0.0
        %1041 = vmatprep.subr.mxu0 0.0
        %1042 = vmatpush2.msra.mxu0 0.0
        %1043 = vmatprep.subr.mxu0 0.0
        %1044 = vmatpush2.msra.mxu0 0.0
        %1045 = vmatprep.subr.mxu0 0.0
        %1046 = vmatpush2.msra.mxu0 0.0
        %1047 = vmatprep.subr.mxu0 0.0
        %1048 = vmatpush2.msra.mxu0 0.0
        %1049 = vmatprep.subr.mxu0 0.0
        %1050 = vmatpush2.msra.mxu0 0.0
        %1051 = vmatprep.subr.mxu0 0.0
        %1052 = vmatpush2.msra.mxu0 0.0
        %1053 = vmatprep.subr.mxu0 0.0
        %1054 = vmatpush2.msra.mxu0 0.0
        %1055 = vmatprep.subr.mxu0 0.0
        %1056 = vmatpush2.msra.mxu0 0.0
        %1057 = vmatprep.subr.mxu0 0.0
        %1058 = vmatpush2.msra.mxu0 0.0
        %1059 = vmatprep.subr.mxu0 0.0
        %1060 = vmatpush2.msra.mxu0 0.0
        %1061 = vmatprep.subr.mxu0 0.0
        %1062 = vmatpush2.msra.mxu0 0.0
        %1063 = vmatprep.subr.mxu0 0.0
        %1064 = vmatpush2.msra.mxu0 0.0
        %1065 = vmatprep.subr.mxu0 0.0
        %1066 = vmatpush2.msra.mxu0 0.0
        %1067 = vmatprep.subr.mxu0 0.0
        %1068 = vmatpush2.msra.mxu0 0.0
        %1069 = vmatprep.subr.mxu0 0.0
        %1070 = vmatpush2.msra.mxu0 0.0
        %1071 = vmatprep.mubr.f32.mxu0 0.0
        %1072 = vmatmul.mubr.f32.gmra.mxu0 %v1005
        %v1073 = vpop.f32.mrf.mxu0
        %v1074 = vadd.f32 0.0, %v1073
        %v1075 = vpop.f32.mrf.mxu0
        %1076 = vdwg.mxu0
        %1077 = vst.msk [vmem:[%s548] sm:$0xff] %vm905, %v1074
        %1078 = vrot.lane.b32.xlu0 %v679, 120
        %v1079 = vpop.permute.xlu0 %1078
        %1080 = vrot.lane.b32.xlu0 %v772, 120
        %v1081 = vpop.permute.xlu0 %1080
        %1082 = vrot.lane.b32.xlu0 %v777, 120
        %v1083 = vpop.permute.xlu0 %1082
        %1084 = vrot.lane.b32.xlu0 %v782, 120
        %v1085 = vpop.permute.xlu0 %1084
        %1086 = vrot.lane.b32.xlu0 %v787, 120
        %v1087 = vpop.permute.xlu0 %1086
        %v1088 = vsel %vm905, %v1079, 0
        %v1090 = vsel %vm905, %v1081, 0
        %v1092 = vsel %vm905, %v1083, 0
        %v1094 = vsel %vm905, %v1085, 0
        %v1096 = vsel %vm905, %v1087, 0
        %1098 = vmatprep.subr.mxu0 0.0
        %1099 = vmatpush1.xpose.msra.mxu0 0.0
        %1100 = vmatprep.subr.mxu0 0.0
        %1101 = vmatpush1.xpose.msra.mxu0 0.0
        %1102 = vmatprep.subr.mxu0 0.0
        %1103 = vmatpush1.xpose.msra.mxu0 0.0
        %1104 = vmatprep.subr.mxu0 0.0
        %1105 = vmatpush1.xpose.msra.mxu0 0.0
        %1106 = vmatprep.subr.mxu0 0.0
        %1107 = vmatpush1.xpose.msra.mxu0 0.0
        %1108 = vmatprep.subr.mxu0 0.0
        %1109 = vmatpush1.xpose.msra.mxu0 0.0
        %1110 = vmatprep.subr.mxu0 0.0
        %1111 = vmatpush1.xpose.msra.mxu0 0.0
        %1112 = vmatprep.subr.mxu0 0.0
        %1113 = vmatpush1.xpose.msra.mxu0 0.0
        %1114 = vmatprep.subr.mxu0 0.0
        %1115 = vmatpush1.xpose.msra.mxu0 0.0
        %1116 = vmatprep.subr.mxu0 0.0
        %1117 = vmatpush1.xpose.msra.mxu0 0.0
        %1118 = vmatprep.subr.mxu0 0.0
        %1119 = vmatpush1.xpose.msra.mxu0 0.0
        %1120 = vmatprep.subr.mxu0 0.0
        %1121 = vmatpush1.xpose.msra.mxu0 0.0
        %1122 = vmatprep.subr.mxu0 0.0
        %1123 = vmatpush1.xpose.msra.mxu0 %v1096
        %1124 = vmatprep.subr.mxu0 0.0
        %1125 = vmatpush1.xpose.msra.mxu0 %v1094
        %1126 = vmatprep.subr.mxu0 0.0
        %1127 = vmatpush1.xpose.msra.mxu0 %v1092
        %1128 = vmatprep.subr.mxu0 0.0
        %1129 = vmatpush1.xpose.msra.mxu0 %v1090
        %1130 = vmatprep.subr.mxu0 0.0
        %1131 = vmatpush2.xpose.msra.mxu0 0.0
        %1132 = vmatprep.subr.mxu0 0.0
        %1133 = vmatpush2.xpose.msra.mxu0 0.0
        %1134 = vmatprep.subr.mxu0 0.0
        %1135 = vmatpush2.xpose.msra.mxu0 0.0
        %1136 = vmatprep.subr.mxu0 0.0
        %1137 = vmatpush2.xpose.msra.mxu0 0.0
        %1138 = vmatprep.subr.mxu0 0.0
        %1139 = vmatpush2.xpose.msra.mxu0 0.0
        %1140 = vmatprep.subr.mxu0 0.0
        %1141 = vmatpush2.xpose.msra.mxu0 0.0
        %1142 = vmatprep.subr.mxu0 0.0
        %1143 = vmatpush2.xpose.msra.mxu0 0.0
        %1144 = vmatprep.subr.mxu0 0.0
        %1145 = vmatpush2.xpose.msra.mxu0 0.0
        %1146 = vmatprep.subr.mxu0 0.0
        %1147 = vmatpush2.xpose.msra.mxu0 0.0
        %1148 = vmatprep.subr.mxu0 0.0
        %1149 = vmatpush2.xpose.msra.mxu0 0.0
        %1150 = vmatprep.subr.mxu0 0.0
        %1151 = vmatpush2.xpose.msra.mxu0 0.0
        %1152 = vmatprep.subr.mxu0 0.0
        %1153 = vmatpush2.xpose.msra.mxu0 0.0
        %1154 = vmatprep.subr.mxu0 0.0
        %1155 = vmatpush2.xpose.msra.mxu0 0.0
        %1156 = vmatprep.subr.mxu0 0.0
        %1157 = vmatpush2.xpose.msra.mxu0 0.0
        %1158 = vmatprep.subr.mxu0 0.0
        %1159 = vmatpush2.xpose.msra.mxu0 0.0
        %1160 = vmatprep.subr.mxu0 0.0
        %1161 = vmatpush2.xpose.msra.mxu0 0.0
        %1162 = vmatprep.mubr.f32.mxu0 0.0
        %1163 = vmatmul.mubr.f32.gmra.mxu0 %v1088
        %v1164 = vpop.f32.mrf.mxu0
        %v1165 = vadd.f32 %v903, %v1164
        %v1166 = vpop.f32.mrf.mxu0
        %1167 = vdwg.mxu0
        %1169 = vrot.lane.b32.xlu0 %v1165, 32
        %v1170 = vpop.permute.xlu0 %1169
        %vm1172 = vcmask 523520
        %1173 = vst.msk [vmem:[%s541] sm:$0xff] %vm1172, %v1170
        %v1174 = vsel %vm608, %v1165, -inf
        %1175 = vmax.xlane.f32.xlu0 %v1174
        %v1176 = vpop.xlane.xlu0 %1175
        %v1177 = vsub.f32 %v1165, %v1176
        %v1178 = vmul.f32 %v1177, 1.442695
        %v1179 = vpow.pop %v1178
        %v1180 = vsel %vm608, %v1179, 0.0
        %1181 = vadd.xlane.f32.xlu0 %v1180
        %v1182 = vpop.xlane.xlu0 %1181
        %v1183 = vrcp.pop %v1182
        %v1184 = vmul.f32 %v1179, %v1183
        %1186 = vrot.lane.b32.xlu0 %v1184, 32
        %v1187 = vpop.permute.xlu0 %1186
        %1189 = vst.msk [vmem:[%s534] sm:$0xff] %vm1172, %v1187
        %1194 = vrot.lane.b32.xlu0 %v880, 120
        %v1195 = vpop.permute.xlu0 %1194
        %1196 = vrot.lane.b32.xlu0 %v885, 120
        %v1197 = vpop.permute.xlu0 %1196
        %1198 = vrot.lane.b32.xlu0 %v890, 120
        %v1199 = vpop.permute.xlu0 %1198
        %1200 = vrot.lane.b32.xlu0 %v895, 120
        %v1201 = vpop.permute.xlu0 %1200
        %v1206 = vsel %vm608, %v1184, 0
        %1208 = vmatprep.subr.mxu0 0.0
        %1209 = vmatpush1.msra.mxu0 0.0
        %1210 = vmatprep.subr.mxu0 0.0
        %1211 = vmatpush1.msra.mxu0 0.0
        %1212 = vmatprep.subr.mxu0 0.0
        %1213 = vmatpush1.msra.mxu0 0.0
        %1214 = vmatprep.subr.mxu0 0.0
        %1215 = vmatpush1.msra.mxu0 0.0
        %1216 = vmatprep.subr.mxu0 0.0
        %1217 = vmatpush1.msra.mxu0 0.0
        %1218 = vmatprep.subr.mxu0 0.0
        %1219 = vmatpush1.msra.mxu0 0.0
        %1220 = vmatprep.subr.mxu0 0.0
        %1221 = vmatpush1.msra.mxu0 0.0
        %1222 = vmatprep.subr.mxu0 0.0
        %1223 = vmatpush1.msra.mxu0 0.0
        %1224 = vmatprep.subr.mxu0 0.0
        %1225 = vmatpush1.msra.mxu0 0.0
        %1226 = vmatprep.subr.mxu0 0.0
        %1227 = vmatpush1.msra.mxu0 0.0
        %1228 = vmatprep.subr.mxu0 0.0
        %1229 = vmatpush1.msra.mxu0 0.0
        %1230 = vmatprep.subr.mxu0 0.0
        %1231 = vmatpush1.msra.mxu0 0.0
        %1232 = vmatprep.subr.mxu0 0.0
        %1233 = vmatpush1.msra.mxu0 %v1201
        %1234 = vmatprep.subr.mxu0 0.0
        %1235 = vmatpush1.msra.mxu0 %v1199
        %1236 = vmatprep.subr.mxu0 0.0
        %1237 = vmatpush1.msra.mxu0 %v1197
        %1238 = vmatprep.subr.mxu0 0.0
        %1239 = vmatpush1.msra.mxu0 %v1195
        %1240 = vmatprep.subr.mxu0 0.0
        %1241 = vmatpush2.msra.mxu0 0.0
        %1242 = vmatprep.subr.mxu0 0.0
        %1243 = vmatpush2.msra.mxu0 0.0
        %1244 = vmatprep.subr.mxu0 0.0
        %1245 = vmatpush2.msra.mxu0 0.0
        %1246 = vmatprep.subr.mxu0 0.0
        %1247 = vmatpush2.msra.mxu0 0.0
        %1248 = vmatprep.subr.mxu0 0.0
        %1249 = vmatpush2.msra.mxu0 0.0
        %1250 = vmatprep.subr.mxu0 0.0
        %1251 = vmatpush2.msra.mxu0 0.0
        %1252 = vmatprep.subr.mxu0 0.0
        %1253 = vmatpush2.msra.mxu0 0.0
        %1254 = vmatprep.subr.mxu0 0.0
        %1255 = vmatpush2.msra.mxu0 0.0
        %1256 = vmatprep.subr.mxu0 0.0
        %1257 = vmatpush2.msra.mxu0 0.0
        %1258 = vmatprep.subr.mxu0 0.0
        %1259 = vmatpush2.msra.mxu0 0.0
        %1260 = vmatprep.subr.mxu0 0.0
        %1261 = vmatpush2.msra.mxu0 0.0
        %1262 = vmatprep.subr.mxu0 0.0
        %1263 = vmatpush2.msra.mxu0 0.0
        %1264 = vmatprep.subr.mxu0 0.0
        %1265 = vmatpush2.msra.mxu0 0.0
        %1266 = vmatprep.subr.mxu0 0.0
        %1267 = vmatpush2.msra.mxu0 0.0
        %1268 = vmatprep.subr.mxu0 0.0
        %1269 = vmatpush2.msra.mxu0 0.0
        %1270 = vmatprep.subr.mxu0 0.0
        %1271 = vmatpush2.msra.mxu0 0.0
        %1272 = vmatprep.mubr.f32.mxu0 0.0
        %1273 = vmatmul.mubr.f32.gmra.mxu0 %v1206
        %v1274 = vpop.f32.mrf.mxu0
        %v1275 = vadd.f32 0.0, %v1274
        %v1276 = vpop.f32.mrf.mxu0
        %1277 = vdwg.mxu0
        %1279 = vrot.lane.b32.xlu0 %v1275, 8
        %v1280 = vpop.permute.xlu0 %1279
        %vm1282 = vcmask 130112
        %1283 = vst.msk [vmem:[%s548] sm:$0xff] %vm1282, %v1280
        %1284 = vrot.lane.b32.xlu0 %v679, 112
        %v1285 = vpop.permute.xlu0 %1284
        %1286 = vrot.lane.b32.xlu0 %v772, 112
        %v1287 = vpop.permute.xlu0 %1286
        %1288 = vrot.lane.b32.xlu0 %v777, 112
        %v1289 = vpop.permute.xlu0 %1288
        %1290 = vrot.lane.b32.xlu0 %v782, 112
        %v1291 = vpop.permute.xlu0 %1290
        %1292 = vrot.lane.b32.xlu0 %v787, 112
        %v1293 = vpop.permute.xlu0 %1292
        %v1294 = vsel %vm905, %v1285, 0
        %v1296 = vsel %vm905, %v1287, 0
        %v1298 = vsel %vm905, %v1289, 0
        %v1300 = vsel %vm905, %v1291, 0
        %v1302 = vsel %vm905, %v1293, 0
        %1304 = vmatprep.subr.mxu0 0.0
        %1305 = vmatpush1.xpose.msra.mxu0 0.0
        %1306 = vmatprep.subr.mxu0 0.0
        %1307 = vmatpush1.xpose.msra.mxu0 0.0
        %1308 = vmatprep.subr.mxu0 0.0
        %1309 = vmatpush1.xpose.msra.mxu0 0.0
        %1310 = vmatprep.subr.mxu0 0.0
        %1311 = vmatpush1.xpose.msra.mxu0 0.0
        %1312 = vmatprep.subr.mxu0 0.0
        %1313 = vmatpush1.xpose.msra.mxu0 0.0
        %1314 = vmatprep.subr.mxu0 0.0
        %1315 = vmatpush1.xpose.msra.mxu0 0.0
        %1316 = vmatprep.subr.mxu0 0.0
        %1317 = vmatpush1.xpose.msra.mxu0 0.0
        %1318 = vmatprep.subr.mxu0 0.0
        %1319 = vmatpush1.xpose.msra.mxu0 0.0
        %1320 = vmatprep.subr.mxu0 0.0
        %1321 = vmatpush1.xpose.msra.mxu0 0.0
        %1322 = vmatprep.subr.mxu0 0.0
        %1323 = vmatpush1.xpose.msra.mxu0 0.0
        %1324 = vmatprep.subr.mxu0 0.0
        %1325 = vmatpush1.xpose.msra.mxu0 0.0
        %1326 = vmatprep.subr.mxu0 0.0
        %1327 = vmatpush1.xpose.msra.mxu0 0.0
        %1328 = vmatprep.subr.mxu0 0.0
        %1329 = vmatpush1.xpose.msra.mxu0 %v1302
        %1330 = vmatprep.subr.mxu0 0.0
        %1331 = vmatpush1.xpose.msra.mxu0 %v1300
        %1332 = vmatprep.subr.mxu0 0.0
        %1333 = vmatpush1.xpose.msra.mxu0 %v1298
        %1334 = vmatprep.subr.mxu0 0.0
        %1335 = vmatpush1.xpose.msra.mxu0 %v1296
        %1336 = vmatprep.subr.mxu0 0.0
        %1337 = vmatpush2.xpose.msra.mxu0 0.0
        %1338 = vmatprep.subr.mxu0 0.0
        %1339 = vmatpush2.xpose.msra.mxu0 0.0
        %1340 = vmatprep.subr.mxu0 0.0
        %1341 = vmatpush2.xpose.msra.mxu0 0.0
        %1342 = vmatprep.subr.mxu0 0.0
        %1343 = vmatpush2.xpose.msra.mxu0 0.0
        %1344 = vmatprep.subr.mxu0 0.0
        %1345 = vmatpush2.xpose.msra.mxu0 0.0
        %1346 = vmatprep.subr.mxu0 0.0
        %1347 = vmatpush2.xpose.msra.mxu0 0.0
        %1348 = vmatprep.subr.mxu0 0.0
        %1349 = vmatpush2.xpose.msra.mxu0 0.0
        %1350 = vmatprep.subr.mxu0 0.0
        %1351 = vmatpush2.xpose.msra.mxu0 0.0
        %1352 = vmatprep.subr.mxu0 0.0
        %1353 = vmatpush2.xpose.msra.mxu0 0.0
        %1354 = vmatprep.subr.mxu0 0.0
        %1355 = vmatpush2.xpose.msra.mxu0 0.0
        %1356 = vmatprep.subr.mxu0 0.0
        %1357 = vmatpush2.xpose.msra.mxu0 0.0
        %1358 = vmatprep.subr.mxu0 0.0
        %1359 = vmatpush2.xpose.msra.mxu0 0.0
        %1360 = vmatprep.subr.mxu0 0.0
        %1361 = vmatpush2.xpose.msra.mxu0 0.0
        %1362 = vmatprep.subr.mxu0 0.0
        %1363 = vmatpush2.xpose.msra.mxu0 0.0
        %1364 = vmatprep.subr.mxu0 0.0
        %1365 = vmatpush2.xpose.msra.mxu0 0.0
        %1366 = vmatprep.subr.mxu0 0.0
        %1367 = vmatpush2.xpose.msra.mxu0 0.0
        %1368 = vmatprep.mubr.f32.mxu0 0.0
        %1369 = vmatmul.mubr.f32.gmra.mxu0 %v1294
        %v1370 = vpop.f32.mrf.mxu0
        %v1371 = vadd.f32 %v903, %v1370
        %v1372 = vpop.f32.mrf.mxu0
        %1373 = vdwg.mxu0
        %1375 = vrot.lane.b32.xlu0 %v1371, 64
        %v1376 = vpop.permute.xlu0 %1375
        %vm1378 = vcmask 785920
        %1379 = vst.msk [vmem:[%s541] sm:$0xff] %vm1378, %v1376
        %v1380 = vsel %vm608, %v1371, -inf
        %1381 = vmax.xlane.f32.xlu0 %v1380
        %v1382 = vpop.xlane.xlu0 %1381
        %v1383 = vsub.f32 %v1371, %v1382
        %v1384 = vmul.f32 %v1383, 1.442695
        %v1385 = vpow.pop %v1384
        %v1386 = vsel %vm608, %v1385, 0.0
        %1387 = vadd.xlane.f32.xlu0 %v1386
        %v1388 = vpop.xlane.xlu0 %1387
        %v1389 = vrcp.pop %v1388
        %v1390 = vmul.f32 %v1385, %v1389
        %1392 = vrot.lane.b32.xlu0 %v1390, 64
        %v1393 = vpop.permute.xlu0 %1392
        %1395 = vst.msk [vmem:[%s534] sm:$0xff] %vm1378, %v1393
        %1396 = vrot.lane.b32.xlu0 %v880, 112
        %v1397 = vpop.permute.xlu0 %1396
        %1398 = vrot.lane.b32.xlu0 %v885, 112
        %v1399 = vpop.permute.xlu0 %1398
        %1400 = vrot.lane.b32.xlu0 %v890, 112
        %v1401 = vpop.permute.xlu0 %1400
        %1402 = vrot.lane.b32.xlu0 %v895, 112
        %v1403 = vpop.permute.xlu0 %1402
        %v1408 = vsel %vm608, %v1390, 0
        %1410 = vmatprep.subr.mxu0 0.0
        %1411 = vmatpush1.msra.mxu0 0.0
        %1412 = vmatprep.subr.mxu0 0.0
        %1413 = vmatpush1.msra.mxu0 0.0
        %1414 = vmatprep.subr.mxu0 0.0
        %1415 = vmatpush1.msra.mxu0 0.0
        %1416 = vmatprep.subr.mxu0 0.0
        %1417 = vmatpush1.msra.mxu0 0.0
        %1418 = vmatprep.subr.mxu0 0.0
        %1419 = vmatpush1.msra.mxu0 0.0
        %1420 = vmatprep.subr.mxu0 0.0
        %1421 = vmatpush1.msra.mxu0 0.0
        %1422 = vmatprep.subr.mxu0 0.0
        %1423 = vmatpush1.msra.mxu0 0.0
        %1424 = vmatprep.subr.mxu0 0.0
        %1425 = vmatpush1.msra.mxu0 0.0
        %1426 = vmatprep.subr.mxu0 0.0
        %1427 = vmatpush1.msra.mxu0 0.0
        %1428 = vmatprep.subr.mxu0 0.0
        %1429 = vmatpush1.msra.mxu0 0.0
        %1430 = vmatprep.subr.mxu0 0.0
        %1431 = vmatpush1.msra.mxu0 0.0
        %1432 = vmatprep.subr.mxu0 0.0
        %1433 = vmatpush1.msra.mxu0 0.0
        %1434 = vmatprep.subr.mxu0 0.0
        %1435 = vmatpush1.msra.mxu0 %v1403
        %1436 = vmatprep.subr.mxu0 0.0
        %1437 = vmatpush1.msra.mxu0 %v1401
        %1438 = vmatprep.subr.mxu0 0.0
        %1439 = vmatpush1.msra.mxu0 %v1399
        %1440 = vmatprep.subr.mxu0 0.0
        %1441 = vmatpush1.msra.mxu0 %v1397
        %1442 = vmatprep.subr.mxu0 0.0
        %1443 = vmatpush2.msra.mxu0 0.0
        %1444 = vmatprep.subr.mxu0 0.0
        %1445 = vmatpush2.msra.mxu0 0.0
        %1446 = vmatprep.subr.mxu0 0.0
        %1447 = vmatpush2.msra.mxu0 0.0
        %1448 = vmatprep.subr.mxu0 0.0
        %1449 = vmatpush2.msra.mxu0 0.0
        %1450 = vmatprep.subr.mxu0 0.0
        %1451 = vmatpush2.msra.mxu0 0.0
        %1452 = vmatprep.subr.mxu0 0.0
        %1453 = vmatpush2.msra.mxu0 0.0
        %1454 = vmatprep.subr.mxu0 0.0
        %1455 = vmatpush2.msra.mxu0 0.0
        %1456 = vmatprep.subr.mxu0 0.0
        %1457 = vmatpush2.msra.mxu0 0.0
        %1458 = vmatprep.subr.mxu0 0.0
        %1459 = vmatpush2.msra.mxu0 0.0
        %1460 = vmatprep.subr.mxu0 0.0
        %1461 = vmatpush2.msra.mxu0 0.0
        %1462 = vmatprep.subr.mxu0 0.0
        %1463 = vmatpush2.msra.mxu0 0.0
        %1464 = vmatprep.subr.mxu0 0.0
        %1465 = vmatpush2.msra.mxu0 0.0
        %1466 = vmatprep.subr.mxu0 0.0
        %1467 = vmatpush2.msra.mxu0 0.0
        %1468 = vmatprep.subr.mxu0 0.0
        %1469 = vmatpush2.msra.mxu0 0.0
        %1470 = vmatprep.subr.mxu0 0.0
        %1471 = vmatpush2.msra.mxu0 0.0
        %1472 = vmatprep.subr.mxu0 0.0
        %1473 = vmatpush2.msra.mxu0 0.0
        %1474 = vmatprep.mubr.f32.mxu0 0.0
        %1475 = vmatmul.mubr.f32.gmra.mxu0 %v1408
        %v1476 = vpop.f32.mrf.mxu0
        %v1477 = vadd.f32 0.0, %v1476
        %v1478 = vpop.f32.mrf.mxu0
        %1479 = vdwg.mxu0
        %1481 = vrot.lane.b32.xlu0 %v1477, 16
        %v1482 = vpop.permute.xlu0 %1481
        %vm1484 = vcmask 195712
        %1485 = vst.msk [vmem:[%s548] sm:$0xff] %vm1484, %v1482
        %1486 = vrot.lane.b32.xlu0 %v679, 104
        %v1487 = vpop.permute.xlu0 %1486
        %1488 = vrot.lane.b32.xlu0 %v772, 104
        %v1489 = vpop.permute.xlu0 %1488
        %1490 = vrot.lane.b32.xlu0 %v777, 104
        %v1491 = vpop.permute.xlu0 %1490
        %1492 = vrot.lane.b32.xlu0 %v782, 104
        %v1493 = vpop.permute.xlu0 %1492
        %1494 = vrot.lane.b32.xlu0 %v787, 104
        %v1495 = vpop.permute.xlu0 %1494
        %v1496 = vsel %vm905, %v1487, 0
        %v1498 = vsel %vm905, %v1489, 0
        %v1500 = vsel %vm905, %v1491, 0
        %v1502 = vsel %vm905, %v1493, 0
        %v1504 = vsel %vm905, %v1495, 0
        %1506 = vmatprep.subr.mxu0 0.0
        %1507 = vmatpush1.xpose.msra.mxu0 0.0
        %1508 = vmatprep.subr.mxu0 0.0
        %1509 = vmatpush1.xpose.msra.mxu0 0.0
        %1510 = vmatprep.subr.mxu0 0.0
        %1511 = vmatpush1.xpose.msra.mxu0 0.0
        %1512 = vmatprep.subr.mxu0 0.0
        %1513 = vmatpush1.xpose.msra.mxu0 0.0
        %1514 = vmatprep.subr.mxu0 0.0
        %1515 = vmatpush1.xpose.msra.mxu0 0.0
        %1516 = vmatprep.subr.mxu0 0.0
        %1517 = vmatpush1.xpose.msra.mxu0 0.0
        %1518 = vmatprep.subr.mxu0 0.0
        %1519 = vmatpush1.xpose.msra.mxu0 0.0
        %1520 = vmatprep.subr.mxu0 0.0
        %1521 = vmatpush1.xpose.msra.mxu0 0.0
        %1522 = vmatprep.subr.mxu0 0.0
        %1523 = vmatpush1.xpose.msra.mxu0 0.0
        %1524 = vmatprep.subr.mxu0 0.0
        %1525 = vmatpush1.xpose.msra.mxu0 0.0
        %1526 = vmatprep.subr.mxu0 0.0
        %1527 = vmatpush1.xpose.msra.mxu0 0.0
        %1528 = vmatprep.subr.mxu0 0.0
        %1529 = vmatpush1.xpose.msra.mxu0 0.0
        %1530 = vmatprep.subr.mxu0 0.0
        %1531 = vmatpush1.xpose.msra.mxu0 %v1504
        %1532 = vmatprep.subr.mxu0 0.0
        %1533 = vmatpush1.xpose.msra.mxu0 %v1502
        %1534 = vmatprep.subr.mxu0 0.0
        %1535 = vmatpush1.xpose.msra.mxu0 %v1500
        %1536 = vmatprep.subr.mxu0 0.0
        %1537 = vmatpush1.xpose.msra.mxu0 %v1498
        %1538 = vmatprep.subr.mxu0 0.0
        %1539 = vmatpush2.xpose.msra.mxu0 0.0
        %1540 = vmatprep.subr.mxu0 0.0
        %1541 = vmatpush2.xpose.msra.mxu0 0.0
        %1542 = vmatprep.subr.mxu0 0.0
        %1543 = vmatpush2.xpose.msra.mxu0 0.0
        %1544 = vmatprep.subr.mxu0 0.0
        %1545 = vmatpush2.xpose.msra.mxu0 0.0
        %1546 = vmatprep.subr.mxu0 0.0
        %1547 = vmatpush2.xpose.msra.mxu0 0.0
        %1548 = vmatprep.subr.mxu0 0.0
        %1549 = vmatpush2.xpose.msra.mxu0 0.0
        %1550 = vmatprep.subr.mxu0 0.0
        %1551 = vmatpush2.xpose.msra.mxu0 0.0
        %1552 = vmatprep.subr.mxu0 0.0
        %1553 = vmatpush2.xpose.msra.mxu0 0.0
        %1554 = vmatprep.subr.mxu0 0.0
        %1555 = vmatpush2.xpose.msra.mxu0 0.0
        %1556 = vmatprep.subr.mxu0 0.0
        %1557 = vmatpush2.xpose.msra.mxu0 0.0
        %1558 = vmatprep.subr.mxu0 0.0
        %1559 = vmatpush2.xpose.msra.mxu0 0.0
        %1560 = vmatprep.subr.mxu0 0.0
        %1561 = vmatpush2.xpose.msra.mxu0 0.0
        %1562 = vmatprep.subr.mxu0 0.0
        %1563 = vmatpush2.xpose.msra.mxu0 0.0
        %1564 = vmatprep.subr.mxu0 0.0
        %1565 = vmatpush2.xpose.msra.mxu0 0.0
        %1566 = vmatprep.subr.mxu0 0.0
        %1567 = vmatpush2.xpose.msra.mxu0 0.0
        %1568 = vmatprep.subr.mxu0 0.0
        %1569 = vmatpush2.xpose.msra.mxu0 0.0
        %1570 = vmatprep.mubr.f32.mxu0 0.0
        %1571 = vmatmul.mubr.f32.gmra.mxu0 %v1496
        %v1572 = vpop.f32.mrf.mxu0
        %v1573 = vadd.f32 %v903, %v1572
        %v1574 = vpop.f32.mrf.mxu0
        %1575 = vdwg.mxu0
        %1577 = vrot.lane.b32.xlu0 %v1573, 96
        %v1578 = vpop.permute.xlu0 %1577
        %vm1580 = vcmask 1048320
        %1581 = vst.msk [vmem:[%s541] sm:$0xff] %vm1580, %v1578
        %v1582 = vsel %vm608, %v1573, -inf
        %1583 = vmax.xlane.f32.xlu0 %v1582
        %v1584 = vpop.xlane.xlu0 %1583
        %v1585 = vsub.f32 %v1573, %v1584
        %v1586 = vmul.f32 %v1585, 1.442695
        %v1587 = vpow.pop %v1586
        %v1588 = vsel %vm608, %v1587, 0.0
        %1589 = vadd.xlane.f32.xlu0 %v1588
        %v1590 = vpop.xlane.xlu0 %1589
        %v1591 = vrcp.pop %v1590
        %v1592 = vmul.f32 %v1587, %v1591
        %1594 = vrot.lane.b32.xlu0 %v1592, 96
        %v1595 = vpop.permute.xlu0 %1594
        %1597 = vst.msk [vmem:[%s534] sm:$0xff] %vm1580, %v1595
        %1598 = vrot.lane.b32.xlu0 %v880, 104
        %v1599 = vpop.permute.xlu0 %1598
        %1600 = vrot.lane.b32.xlu0 %v885, 104
        %v1601 = vpop.permute.xlu0 %1600
        %1602 = vrot.lane.b32.xlu0 %v890, 104
        %v1603 = vpop.permute.xlu0 %1602
        %1604 = vrot.lane.b32.xlu0 %v895, 104
        %v1605 = vpop.permute.xlu0 %1604
        %v1610 = vsel %vm608, %v1592, 0
        %1612 = vmatprep.subr.mxu0 0.0
        %1613 = vmatpush1.msra.mxu0 0.0
        %1614 = vmatprep.subr.mxu0 0.0
        %1615 = vmatpush1.msra.mxu0 0.0
        %1616 = vmatprep.subr.mxu0 0.0
        %1617 = vmatpush1.msra.mxu0 0.0
        %1618 = vmatprep.subr.mxu0 0.0
        %1619 = vmatpush1.msra.mxu0 0.0
        %1620 = vmatprep.subr.mxu0 0.0
        %1621 = vmatpush1.msra.mxu0 0.0
        %1622 = vmatprep.subr.mxu0 0.0
        %1623 = vmatpush1.msra.mxu0 0.0
        %1624 = vmatprep.subr.mxu0 0.0
        %1625 = vmatpush1.msra.mxu0 0.0
        %1626 = vmatprep.subr.mxu0 0.0
        %1627 = vmatpush1.msra.mxu0 0.0
        %1628 = vmatprep.subr.mxu0 0.0
        %1629 = vmatpush1.msra.mxu0 0.0
        %1630 = vmatprep.subr.mxu0 0.0
        %1631 = vmatpush1.msra.mxu0 0.0
        %1632 = vmatprep.subr.mxu0 0.0
        %1633 = vmatpush1.msra.mxu0 0.0
        %1634 = vmatprep.subr.mxu0 0.0
        %1635 = vmatpush1.msra.mxu0 0.0
        %1636 = vmatprep.subr.mxu0 0.0
        %1637 = vmatpush1.msra.mxu0 %v1605
        %1638 = vmatprep.subr.mxu0 0.0
        %1639 = vmatpush1.msra.mxu0 %v1603
        %1640 = vmatprep.subr.mxu0 0.0
        %1641 = vmatpush1.msra.mxu0 %v1601
        %1642 = vmatprep.subr.mxu0 0.0
        %1643 = vmatpush1.msra.mxu0 %v1599
        %1644 = vmatprep.subr.mxu0 0.0
        %1645 = vmatpush2.msra.mxu0 0.0
        %1646 = vmatprep.subr.mxu0 0.0
        %1647 = vmatpush2.msra.mxu0 0.0
        %1648 = vmatprep.subr.mxu0 0.0
        %1649 = vmatpush2.msra.mxu0 0.0
        %1650 = vmatprep.subr.mxu0 0.0
        %1651 = vmatpush2.msra.mxu0 0.0
        %1652 = vmatprep.subr.mxu0 0.0
        %1653 = vmatpush2.msra.mxu0 0.0
        %1654 = vmatprep.subr.mxu0 0.0
        %1655 = vmatpush2.msra.mxu0 0.0
        %1656 = vmatprep.subr.mxu0 0.0
        %1657 = vmatpush2.msra.mxu0 0.0
        %1658 = vmatprep.subr.mxu0 0.0
        %1659 = vmatpush2.msra.mxu0 0.0
        %1660 = vmatprep.subr.mxu0 0.0
        %1661 = vmatpush2.msra.mxu0 0.0
        %1662 = vmatprep.subr.mxu0 0.0
        %1663 = vmatpush2.msra.mxu0 0.0
        %1664 = vmatprep.subr.mxu0 0.0
        %1665 = vmatpush2.msra.mxu0 0.0
        %1666 = vmatprep.subr.mxu0 0.0
        %1667 = vmatpush2.msra.mxu0 0.0
        %1668 = vmatprep.subr.mxu0 0.0
        %1669 = vmatpush2.msra.mxu0 0.0
        %1670 = vmatprep.subr.mxu0 0.0
        %1671 = vmatpush2.msra.mxu0 0.0
        %1672 = vmatprep.subr.mxu0 0.0
        %1673 = vmatpush2.msra.mxu0 0.0
        %1674 = vmatprep.subr.mxu0 0.0
        %1675 = vmatpush2.msra.mxu0 0.0
        %1676 = vmatprep.mubr.f32.mxu0 0.0
        %1677 = vmatmul.mubr.f32.gmra.mxu0 %v1610
        %v1678 = vpop.f32.mrf.mxu0
        %v1679 = vadd.f32 0.0, %v1678
        %v1680 = vpop.f32.mrf.mxu0
        %1681 = vdwg.mxu0
        %1683 = vrot.lane.b32.xlu0 %v1679, 24
        %v1684 = vpop.permute.xlu0 %1683
        %vm1686 = vcmask 261312
        %1687 = vst.msk [vmem:[%s548] sm:$0xff] %vm1686, %v1684
        %s1688 = sand.u32 %s322, 1
        %s1689 = scalar_lea.sflag [#allocation3], %s1688
        %s1690 = sand.u32 %s322, 1
        %s1691 = smul.addr %s1690, 8
        %s1692 = scalar_lea.vmem [#allocation2], %s1691
        %s1693 = sand.u32 %s32, 1
        %s1694 = scalar_lea.sflag [#allocation5], %s1693
        %s1695 = sand.u32 %s348, 1
        %s1696 = smul.addr %s1695, 8
        %s1697 = scalar_lea.vmem [#allocation4], %s1696
        %s1698 = sand.u32 %s32, 1
        %s1699 = scalar_lea.sflag [#allocation5], %s1698
        %s1700 = sand.u32 %s374, 1
        %s1701 = smul.addr %s1700, 8
        %s1702 = scalar_lea.vmem [#allocation6], %s1701
        // Predicated region
        $region69: #{tpu_custom_call.1} parent=67 // pred_check
          %p1703 = pneg %p332
        $region70: #{tpu_custom_call.1} parent=67 // pred_check_branch
          %1705 = sbr.rel (%p1703) target = $region72
        $region71: #{tpu_custom_call.1} parent=67 // pred_region
          %s1707 = ssub.s32 128, 128
          %1708 = vsyncadd %s1689, %s1707
          %s1709 = smul.addr %s32, 128
          %s1710 = scalar_lea.hbm %s12, %s1709
          %s1712 = sshll.u32 %s1692, 4
          %s1713 = int_to_ptr.vmem [resolvable:$true] %s1712
          %1715 = dma.vmem_to_hbm [thread:$0]  %s1713, 128, %s1710, %s1689
        $region72: #{tpu_custom_call.1} parent=67 // pred_fallthru
          _
        // Predicated region
        $region73: #{tpu_custom_call.1} parent=67 // pred_check
          %p1716 = pneg %p358
        $region74: #{tpu_custom_call.1} parent=67 // pred_check_branch
          %1718 = sbr.rel (%p1716) target = $region76
        $region75: #{tpu_custom_call.1} parent=67 // pred_region
          %s1720 = ssub.s32 128, 128
          %1721 = vsyncadd %s1694, %s1720
          %s1722 = smul.addr %s32, 128
          %s1723 = scalar_lea.hbm %s13, %s1722
          %s1725 = sshll.u32 %s1697, 4
          %s1726 = int_to_ptr.vmem [resolvable:$true] %s1725
          %1728 = dma.vmem_to_hbm [thread:$0]  %s1726, 128, %s1723, %s1694
        $region76: #{tpu_custom_call.1} parent=67 // pred_fallthru
          _
        // Predicated region
        $region77: #{tpu_custom_call.1} parent=67 // pred_check
          %p1729 = pneg %p384
        $region78: #{tpu_custom_call.1} parent=67 // pred_check_branch
          %1731 = sbr.rel (%p1729) target = $region80
        $region79: #{tpu_custom_call.1} parent=67 // pred_region
          %s1733 = ssub.s32 128, 128
          %1734 = vsyncadd %s1699, %s1733
          %s1735 = smul.addr %s32, 128
          %s1736 = scalar_lea.hbm %s14, %s1735
          %s1738 = sshll.u32 %s1702, 4
          %s1739 = int_to_ptr.vmem [resolvable:$true] %s1738
          %1741 = dma.vmem_to_hbm [thread:$0]  %s1739, 128, %s1736, %s1699
        $region80: #{tpu_custom_call.1} parent=67 // pred_fallthru
          _
      $region68: #{tpu_custom_call.1} parent=5 // pred_fallthru
        _
      %p1742 = scmp.le.s32.totalorder 2, %s27
      // Predicated region
      $region81: #{tpu_custom_call.1} parent=5 // pred_check
        %p1743 = pneg %p1742
      $region82: #{tpu_custom_call.1} parent=5 // pred_check_branch
        %1745 = sbr.rel (%p1743) target = $region84
      $region83: #{tpu_custom_call.1} parent=5 // pred_region
        %s1746 = ssub.s32 %s27, 2
        // Predicated region
        $region85: #{tpu_custom_call.1} parent=83 // pred_check
          %p1747 = pneg %p338
        $region86: #{tpu_custom_call.1} parent=83 // pred_check_branch
          %1749 = sbr.rel (%p1747) target = $region88
        $region87: #{tpu_custom_call.1} parent=83 // pred_region
          %s1750 = sand.u32 %s323, 1
          %s1751 = scalar_lea.sflag [#allocation3], %s1750
          %s1752 = sand.u32 %s323, 1
          %s1753 = smul.addr %s1752, 8
          %s1754 = scalar_lea.vmem [#allocation2], %s1753
          %1755 = dma.done %s1751, 128
        $region88: #{tpu_custom_call.1} parent=83 // pred_fallthru
          _
        // Predicated region
        $region89: #{tpu_custom_call.1} parent=83 // pred_check
          %p1756 = pneg %p364
        $region90: #{tpu_custom_call.1} parent=83 // pred_check_branch
          %1758 = sbr.rel (%p1756) target = $region92
        $region91: #{tpu_custom_call.1} parent=83 // pred_region
          %s1759 = sand.u32 %s33, 1
          %s1760 = scalar_lea.sflag [#allocation5], %s1759
          %s1761 = sand.u32 %s349, 1
          %s1762 = smul.addr %s1761, 8
          %s1763 = scalar_lea.vmem [#allocation4], %s1762
          %1764 = dma.done %s1760, 128
        $region92: #{tpu_custom_call.1} parent=83 // pred_fallthru
          _
        // Predicated region
        $region93: #{tpu_custom_call.1} parent=83 // pred_check
          %p1765 = pneg %p390
        $region94: #{tpu_custom_call.1} parent=83 // pred_check_branch
          %1767 = sbr.rel (%p1765) target = $region96
        $region95: #{tpu_custom_call.1} parent=83 // pred_region
          %s1768 = sand.u32 %s33, 1
          %s1769 = scalar_lea.sflag [#allocation5], %s1768
          %s1770 = sand.u32 %s375, 1
          %s1771 = smul.addr %s1770, 8
          %s1772 = scalar_lea.vmem [#allocation6], %s1771
          %1773 = dma.done %s1769, 128
        $region96: #{tpu_custom_call.1} parent=83 // pred_fallthru
          _
      $region84: #{tpu_custom_call.1} parent=5 // pred_fallthru
        _
    $region6: #{tpu_custom_call.1} parent=1 // loop_footer
      %s31 = sadd.s32 1, %s27
    $region7: #{tpu_custom_call.1} parent=1 // loop_footer_branch
      %26 = sbr.rel target = $region3
    $region8: #{tpu_custom_call.1} parent=1 // loop_exit
      _
    %1774 = vsyncpa [#allocation3], 1
    %s1775 = scalar_lea.sflag [#allocation3], 1
    %1776 = vsyncpa %s1775, 1
    %1777 = vsyncpa [#allocation5], 1
    %s1778 = scalar_lea.sflag [#allocation5], 1
    %1779 = vsyncpa %s1778, 1

</llo_original>
